<compile_context>
chip_gen: v5e
topology: v5e:2x2
jax: 0.10.0
libtpu: 0.0.40
codegen_flags: <defaults>
</compile_context>

<pallas_src>
import numpy as np
import jax
import jax.numpy as jnp
from jax.experimental import pallas as pl
from jax.experimental.pallas import tpu as pltpu


# ----------------------------- Pallas kernel ---------------------------------

def text_conv_pixel_kernel(x_ref, wsq_ref, sh1_ref, wcomb_ref, sh2_ref, o_ref):
    # x:     (C, TP)  pixel tile, NCHW-flat layout (pixels on lanes), f32
    # wsq:   (S, C)   conv_squeeze weight with bn1 scale folded in, bf16
    # sh1:   (S, 1)   folded bn1 shift, f32
    # wcomb: (C, S)   conv_expand @ dynamic-text weight, bn2 scale folded in, bf16
    # sh2:   (C, 1)   folded bn2 shift, f32
    x = x_ref[...].astype(jnp.bfloat16)                                   # bf16 MXU operand
    y = jnp.dot(wsq_ref[...], x, preferred_element_type=jnp.float32)      # (S, TP)
    y = jnp.maximum(y + sh1_ref[...], 0.0)                                # bn1 + relu1 (f32 VPU)
    o = jnp.dot(wcomb_ref[...], y.astype(jnp.bfloat16),
                preferred_element_type=jnp.float32)                       # (C, TP)
    o = jnp.maximum(o + sh2_ref[...], 0.0)                                # bn2 + relu2 (f32 VPU)
    o_ref[...] = o.astype(o_ref.dtype)


# ------------------------------ pallas_call wrapper ---------------------------

def _pick_pixel_tile(B, HW, tp_max):
    """Pick a pixel tile that exactly divides HW (no wrapper pad/slice) and keeps
    the grid >= 2 steps for v7x megacore when possible."""
    if HW % 128 == 0:
        n128 = HW // 128
        cap = max(1, min(tp_max, HW) // 128)
        blocks = next(c for c in range(cap, 0, -1) if n128 % c == 0)
        tp_eff = blocks * 128
        if B * (HW // tp_eff) < 2 and n128 % 2 == 0:
            tp_eff = (n128 // 2) * 128          # split so both TCs get a step
    else:
        # TODO(synk): non-128-multiple H*W (e.g. 28x28=784) -> full-extent pixel
        # block; tail lane stores are masked (slower) but avoids extra pad/slice
        # HBM passes.
        tp_eff = HW
    return tp_eff, HW // tp_eff


def run_pixel_kernel(x_bcp, wsq_eff, sh1, wcomb_eff, sh2, tp=2048, out_dtype=None):
    """x_bcp: (B, C, H*W) float32 -- NCHW with spatial dims flattened (free reshape)."""
    B, C, HW = x_bcp.shape
    S = wsq_eff.shape[0]
    out_dtype = out_dtype or x_bcp.dtype

    tp_eff, n_tiles = _pick_pixel_tile(B, HW, tp)

    # VMEM budget: x + out double-buffered, (S, tp) intermediate, tiny weights.
    out_itemsize = jnp.dtype(out_dtype).itemsize
    vmem_needed = (2 * C * tp_eff * 4 +            # x tile, double-buffered (f32)
                   2 * C * tp_eff * out_itemsize + # out tile, double-buffered
                   2 * S * tp_eff * 4 +            # intermediate headroom
                   4 * (S * C + C * S) * 2)        # weights (bf16)
    vmem_limit = int(min(max(32 * 1024 * 1024, 2 * vmem_needed), 64 * 1024 * 1024))

    out = pl.pallas_call(
        text_conv_pixel_kernel,
        out_shape=jax.ShapeDtypeStruct((B, C, HW), out_dtype),
        grid_spec=pltpu.PrefetchScalarGridSpec(
            num_scalar_prefetch=0,
            grid=(B, n_tiles),
            in_specs=[
                pl.BlockSpec((None, C, tp_eff), lambda b, j: (b, 0, j)),
                pl.BlockSpec((S, C), lambda b, j: (0, 0)),
                pl.BlockSpec((S, 1), lambda b, j: (0, 0)),
                pl.BlockSpec((C, S), lambda b, j: (0, 0)),
                pl.BlockSpec((C, 1), lambda b, j: (0, 0)),
            ],
            out_specs=pl.BlockSpec((None, C, tp_eff), lambda b, j: (b, 0, j)),
        ),
        compiler_params=pltpu.CompilerParams(
            dimension_semantics=("parallel", "parallel"),
            vmem_limit_bytes=vmem_limit),
    )(x_bcp, wsq_eff, sh1, wcomb_eff, sh2)
    return out


# ------------------------------ glue helpers ----------------------------------

def adaptive_avg_pool_1d_matrix(in_len, out_len):
    """(out_len, in_len) averaging matrix reproducing AdaptiveAvgPool1d binning."""
    m = np.zeros((out_len, in_len), np.float32)
    for k in range(out_len):
        s = (k * in_len) // out_len
        e = -((-(k + 1) * in_len) // out_len)  # ceil
        m[k, s:e] = 1.0 / (e - s)
    return jnp.asarray(m)


def fold_bn(gamma, beta, mean, var, eps=1e-5):
    scale = gamma / jnp.sqrt(var + eps)
    shift = beta - mean * scale
    return scale, shift


def prepare_pixel_weights(text_features, params, in_channel,
                          down_factor=None, top_feature=False):
    """Text branch + weight preprocessing (tiny, one-time; plain XLA per perf review)."""
    squeeze_c = in_channel // down_factor if down_factor else in_channel
    mid_channel = squeeze_c * 4 if top_feature else squeeze_c
    K = 4096 // in_channel
    d2 = params["w_td"].shape[0]
    assert mid_channel * squeeze_c == d2 * K, "view((mid, squeeze, 1, 1)) size mismatch"

    if text_features.ndim == 3:
        text_features = text_features[None]                    # unsqueeze(dim=0)

    # TODO(synk): `weight_module((1, 1, 4096 // in_channel))` is defined outside the
    # reference module; approximated here as an adaptive average pool of the token
    # axis to length 4096 // in_channel (its conditioning on x is not reproduced).
    tf = text_features[0, 0]                                   # (L, text_last_dim)
    pool = adaptive_avg_pool_1d_matrix(tf.shape[0], K)         # (K, L)
    tf = pool @ tf                                             # (K, text_last_dim)

    # nn.Linear text_down: far too small to pay a pallas_call launch for.
    td = tf @ params["w_td"].T + params["b_td"]                # (K, d2)

    # permute(0, 1, 3, 2).contiguous().view((mid, squeeze, 1, 1))
    w_dyn = jnp.transpose(td).reshape(mid_channel, squeeze_c)  # (M, S)

    # No nonlinearity between the dynamic conv and conv_expand -> combine weights.
    w_comb = params["w_ex"] @ w_dyn                            # (C, S)

    # TODO(synk): BatchNorm folded in eval mode (running stats); training-mode
    # batch statistics are not computed inside the kernel.
    s1, sh1 = fold_bn(params["bn1_gamma"], params["bn1_beta"],
                      params["bn1_mean"], params["bn1_var"])
    s2, sh2 = fold_bn(params["bn2_gamma"], params["bn2_beta"],
                      params["bn2_mean"], params["bn2_var"])

    # Fold BN scales into weight rows; cast weights to bf16 for the MXU.
    wsq_eff = (params["w_sq"] * s1[:, None]).astype(jnp.bfloat16)    # (S, C)
    wcomb_eff = (w_comb * s2[:, None]).astype(jnp.bfloat16)          # (C, S)
    sh1 = sh1.reshape(squeeze_c, 1).astype(jnp.float32)
    sh2 = sh2.reshape(in_channel, 1).astype(jnp.float32)
    return wsq_eff, sh1, wcomb_eff, sh2


def make_params(in_channel, text_last_dim, down_factor=None, top_feature=False):
    squeeze_c = in_channel // down_factor if down_factor else in_channel
    mid_channel = squeeze_c * 4 if top_feature else squeeze_c
    key = jax.random.PRNGKey(0)
    ks = jax.random.split(key, 12)
    d2 = text_last_dim // 2
    p = {
        # nn.Linear(text_last_dim, text_last_dim//2): weight (out, in), bias (out,)
        "w_td": jax.random.normal(ks[0], (d2, text_last_dim), jnp.float32) * 0.02,
        "b_td": jax.random.normal(ks[1], (d2,), jnp.float32) * 0.02,
        # nn.Conv2d(in_channel, squeeze_c, 1, bias=False): (out, in)
        "w_sq": jax.random.normal(ks[2], (squeeze_c, in_channel), jnp.float32) * 0.05,
        # nn.Conv2d(mid_channel, in_channel, 1, bias=False): (out, in)
        "w_ex": jax.random.normal(ks[3], (in_channel, mid_channel), jnp.float32) * 0.05,
        # BatchNorm2d(squeeze_c)
        "bn1_gamma": 1.0 + 0.1 * jax.random.normal(ks[4], (squeeze_c,), jnp.float32),
        "bn1_beta": 0.1 * jax.random.normal(ks[5], (squeeze_c,), jnp.float32),
        "bn1_mean": 0.1 * jax.random.normal(ks[6], (squeeze_c,), jnp.float32),
        "bn1_var": 1.0 + 0.1 * jax.random.uniform(ks[7], (squeeze_c,), jnp.float32),
        # BatchNorm2d(in_channel)
        "bn2_gamma": 1.0 + 0.1 * jax.random.normal(ks[8], (in_channel,), jnp.float32),
        "bn2_beta": 0.1 * jax.random.normal(ks[9], (in_channel,), jnp.float32),
        "bn2_mean": 0.1 * jax.random.normal(ks[10], (in_channel,), jnp.float32),
        "bn2_var": 1.0 + 0.1 * jax.random.uniform(ks[11], (in_channel,), jnp.float32),
    }
    return p, squeeze_c, mid_channel


# ------------------------------ forward ----------------------------------------

def text_conv_forward(x, text_features, params, in_channel,
                      down_factor=None, top_feature=False, tp=2048, out_dtype=None):
    wsq_eff, sh1, wcomb_eff, sh2 = prepare_pixel_weights(
        text_features, params, in_channel, down_factor, top_feature)

    B, C, H, W = x.shape
    x_bcp = x.reshape(B, C, H * W)        # free reshape: NCHW stays channel-major
    out = run_pixel_kernel(x_bcp, wsq_eff, sh1, wcomb_eff, sh2, tp=tp,
                           out_dtype=out_dtype)
    return out.reshape(B, C, H, W)        # free reshape back to NCHW


def _reference_pixel(x_bcp, wsq_eff, sh1, wcomb_eff, sh2, out_dtype):
    """Pure-XLA reference with the same bf16/f32 precision contract as the kernel."""
    xb = x_bcp.astype(jnp.bfloat16)
    y = jnp.einsum("sc,bcp->bsp", wsq_eff, xb, preferred_element_type=jnp.float32)
    y = jnp.maximum(y + sh1[None], 0.0)
    o = jnp.einsum("cs,bsp->bcp", wcomb_eff, y.astype(jnp.bfloat16),
                   preferred_element_type=jnp.float32)
    o = jnp.maximum(o + sh2[None], 0.0)
    return o.astype(out_dtype)


# ------------------------------ main --------------------------------------------

if __name__ == "__main__":
    in_channel = 128          # smallest in_channel for which view((C, C, 1, 1)) is valid
    text_last_dim = 512 * 2   # module default
    B, H, W = 2, 32, 32       # HW = 1024 -> one 1024-pixel tile per image (2 grid steps)
    L = 8                     # text tokens

    params, squeeze_c, mid_channel = make_params(in_channel, text_last_dim)

    key = jax.random.PRNGKey(0)
    kx, kt = jax.random.split(key)
    x = jax.random.normal(kx, (B, in_channel, H, W), jnp.float32)
    text_features = jax.random.normal(kt, (1, L, text_last_dim), jnp.float32)

    out = text_conv_forward(x, text_features, params, in_channel, tp=2048)
    out = jax.block_until_ready(out)

    assert out.shape == (B, in_channel, H, W), out.shape
    assert out.dtype == jnp.float32
    assert bool(jnp.all(jnp.isfinite(out)))
    assert bool(jnp.all(out >= 0.0))   # final ReLU

    # Numerical check against a pure-XLA reference using the same precision contract.
    wsq_eff, sh1, wcomb_eff, sh2 = prepare_pixel_weights(
        text_features, params, in_channel)
    ref = _reference_pixel(x.reshape(B, in_channel, H * W),
                           wsq_eff, sh1, wcomb_eff, sh2, jnp.float32)
    ref = ref.reshape(B, in_channel, H, W)
    err = jnp.max(jnp.abs(out - ref)) / (jnp.max(jnp.abs(ref)) + 1e-6)
    assert bool(err < 1e-2), f"kernel mismatch vs reference: rel err {float(err)}"

    print("KERNEL_OK")
</pallas_src>

<mosaic_0001>
module attributes {stable_mosaic.version = 11 : i64} {
  func.func @text_conv_pixel_kernel(%arg0: i32, %arg1: i32, %arg2: memref<1x128x1024xf32, #tpu.memory_space<vmem>>, %arg3: memref<128x128xbf16, #tpu.memory_space<vmem>>, %arg4: memref<128x1xf32, #tpu.memory_space<vmem>>, %arg5: memref<128x128xbf16, #tpu.memory_space<vmem>>, %arg6: memref<128x1xf32, #tpu.memory_space<vmem>>, %arg7: memref<1x128x1024xf32, #tpu.memory_space<vmem>>) attributes {dimension_semantics = [#tpu.dimension_semantics<parallel>, #tpu.dimension_semantics<parallel>], iteration_bounds = array<i64: 2, 1>, scalar_prefetch = 0 : i64, scratch_operands = 0 : i64, tpu.core_type = #tpu.core_type<tc>, window_params = [{transform_indices = @transform_0, window_bounds = array<i64: 1, 128, 1024>}, {pipeline_mode = #tpu.pipeline_mode<synchronous>, transform_indices = @transform_1, window_bounds = array<i64: 128, 128>}, {pipeline_mode = #tpu.pipeline_mode<synchronous>, transform_indices = @transform_2, window_bounds = array<i64: 128, 1>}, {pipeline_mode = #tpu.pipeline_mode<synchronous>, transform_indices = @transform_3, window_bounds = array<i64: 128, 128>}, {pipeline_mode = #tpu.pipeline_mode<synchronous>, transform_indices = @transform_4, window_bounds = array<i64: 128, 1>}, {transform_indices = @transform_5, window_bounds = array<i64: 1, 128, 1024>}]} {
    %c0 = arith.constant 0 : index
    %c0_0 = arith.constant 0 : index
    %c0_1 = arith.constant 0 : index
    %0 = vector.load %arg2[%c0, %c0_0, %c0_1] : memref<1x128x1024xf32, #tpu.memory_space<vmem>>, vector<1x128x1024xf32>
    %1 = vector.shape_cast %0 : vector<1x128x1024xf32> to vector<128x1024xf32>
    %2 = arith.truncf %1 : vector<128x1024xf32> to vector<128x1024xbf16>
    %c0_2 = arith.constant 0 : index
    %c0_3 = arith.constant 0 : index
    %3 = vector.load %arg3[%c0_2, %c0_3] : memref<128x128xbf16, #tpu.memory_space<vmem>>, vector<128x128xbf16>
    %cst = arith.constant dense<0.000000e+00> : vector<128x1024xf32>
    %4 = tpu.matmul %3, %2, %cst {dimension_numbers = #tpu.dot_dimension_numbers<[1], [0], [0], [1], [0, 0, 1, 1], [], []>} : vector<128x128xbf16>, vector<128x1024xbf16>, vector<128x1024xf32> -> vector<128x1024xf32>
    %c0_4 = arith.constant 0 : index
    %c0_5 = arith.constant 0 : index
    %5 = vector.load %arg4[%c0_4, %c0_5] : memref<128x1xf32, #tpu.memory_space<vmem>>, vector<128x1xf32>
    %6 = vector.broadcast %5 : vector<128x1xf32> to vector<128x1024xf32>
    %7 = arith.addf %4, %6 : vector<128x1024xf32>
    %cst_6 = arith.constant 0.000000e+00 : f32
    %8 = vector.broadcast %cst_6 : f32 to vector<128x1024xf32>
    %9 = arith.maximumf %7, %8 : vector<128x1024xf32>
    %c0_7 = arith.constant 0 : index
    %c0_8 = arith.constant 0 : index
    %10 = vector.load %arg5[%c0_7, %c0_8] : memref<128x128xbf16, #tpu.memory_space<vmem>>, vector<128x128xbf16>
    %11 = arith.truncf %9 : vector<128x1024xf32> to vector<128x1024xbf16>
    %cst_9 = arith.constant dense<0.000000e+00> : vector<128x1024xf32>
    %12 = tpu.matmul %10, %11, %cst_9 {dimension_numbers = #tpu.dot_dimension_numbers<[1], [0], [0], [1], [0, 0, 1, 1], [], []>} : vector<128x128xbf16>, vector<128x1024xbf16>, vector<128x1024xf32> -> vector<128x1024xf32>
    %c0_10 = arith.constant 0 : index
    %c0_11 = arith.constant 0 : index
    %13 = vector.load %arg6[%c0_10, %c0_11] : memref<128x1xf32, #tpu.memory_space<vmem>>, vector<128x1xf32>
    %14 = vector.broadcast %13 : vector<128x1xf32> to vector<128x1024xf32>
    %15 = arith.addf %12, %14 : vector<128x1024xf32>
    %cst_12 = arith.constant 0.000000e+00 : f32
    %16 = vector.broadcast %cst_12 : f32 to vector<128x1024xf32>
    %17 = arith.maximumf %15, %16 : vector<128x1024xf32>
    %c0_13 = arith.constant 0 : index
    %c0_14 = arith.constant 0 : index
    %c0_15 = arith.constant 0 : index
    %18 = vector.load %arg7[%c0_13, %c0_14, %c0_15] : memref<1x128x1024xf32, #tpu.memory_space<vmem>>, vector<1x128x1024xf32>
    %19 = vector.shape_cast %18 : vector<1x128x1024xf32> to vector<128x1024xf32>
    %20 = vector.shape_cast %17 : vector<128x1024xf32> to vector<1x128x1024xf32>
    tpu.vector_store %arg7[%c0_13, %c0_14, %c0_15], %20 {strides = array<i32>} : memref<1x128x1024xf32, #tpu.memory_space<vmem>>, vector<1x128x1024xf32>,
    return
  }
  func.func @transform_0(%arg0: i32, %arg1: i32) -> (i32, i32, i32) {
    %c0_i32 = arith.constant 0 : i32
    %c0_i32_0 = arith.constant 0 : i32
    return %arg0, %c0_i32, %arg1 : i32, i32, i32
  }
  func.func @transform_1(%arg0: i32, %arg1: i32) -> (i32, i32) {
    %c0_i32 = arith.constant 0 : i32
    %c0_i32_0 = arith.constant 0 : i32
    %c0_i32_1 = arith.constant 0 : i32
    return %c0_i32, %c0_i32_0 : i32, i32
  }
  func.func @transform_2(%arg0: i32, %arg1: i32) -> (i32, i32) {
    %c0_i32 = arith.constant 0 : i32
    %c0_i32_0 = arith.constant 0 : i32
    %c0_i32_1 = arith.constant 0 : i32
    return %c0_i32, %c0_i32_0 : i32, i32
  }
  func.func @transform_3(%arg0: i32, %arg1: i32) -> (i32, i32) {
    %c0_i32 = arith.constant 0 : i32
    %c0_i32_0 = arith.constant 0 : i32
    %c0_i32_1 = arith.constant 0 : i32
    return %c0_i32, %c0_i32_0 : i32, i32
  }
  func.func @transform_4(%arg0: i32, %arg1: i32) -> (i32, i32) {
    %c0_i32 = arith.constant 0 : i32
    %c0_i32_0 = arith.constant 0 : i32
    %c0_i32_1 = arith.constant 0 : i32
    return %c0_i32, %c0_i32_0 : i32, i32
  }
  func.func @transform_5(%arg0: i32, %arg1: i32) -> (i32, i32, i32) {
    %c0_i32 = arith.constant 0 : i32
    %c0_i32_0 = arith.constant 0 : i32
    return %arg0, %c0_i32, %arg1 : i32, i32, i32
  }
}

</mosaic_0001>

<llo_original>
// kernel: tpu_custom_call.1
$region0: #{tpu_custom_call.1}
  #allocation0 [shape = 'u32[]', space=smem, size = 0x4, offset = 0x4, fixed_abs, tag = 'smem constant byte address 0x4 - core index']
  #allocation1 [shape = 'u32[72,128]{1,0:T(1,128)}', space=vmem, size = 0x9000, scoped, tag = 'internal scratch']
  %s0 = inlined_call_operand.hbm [shape: f32[2,128,1024], index: 0, kind: input, shape index: {}]
  %s1 = inlined_call_operand.vmem [shape: bf16[128,128], index: 1, kind: input, shape index: {}]
  %s2 = inlined_call_operand.vmem [shape: f32[128,1], index: 2, kind: input, shape index: {}]
  %s3 = inlined_call_operand.vmem [shape: bf16[128,128], index: 3, kind: input, shape index: {}]
  %s4 = inlined_call_operand.vmem [shape: f32[128,1], index: 4, kind: input, shape index: {}]
  %s5 = inlined_call_operand.hbm [shape: f32[2,128,1024], index: 5, kind: output, shape index: {}]
  %s6 = sld [smem:[#allocation0]]
  $region57: #{tpu_custom_call.1} parent=0
    _
  %s8 = ssub.s32 1, %s6
  %s9 = scalar_select 0, %s8, %s6
  $region1: #{tpu_custom_call.1} parent=0
    #allocation2 [shape = 'u8[1048576]{0}', space=vmem, size = 0x100000, scoped, tag = 'input window, operand 0']
    #allocation3 [shape = 's32[2]{0}', space=sflag, size = 0x8, scoped, tag = 'scoped memory for tpu_custom_call.1']
    #allocation4 [shape = 's32[2]{0}', space=sflag, size = 0x8, scoped, tag = 'scoped memory for tpu_custom_call.1']
    #allocation5 [shape = 'u8[1048576]{0}', space=vmem, size = 0x100000, scoped, tag = 'output window, operand 0']
    %10 = vsyncpa [#allocation3], 0
    %s11 = scalar_lea.sflag [#allocation3], 1
    %12 = vsyncpa %s11, 0
    %13 = vsyncpa [#allocation4], 0
    %s14 = scalar_lea.sflag [#allocation4], 1
    %15 = vsyncpa %s14, 0
    loop: start=0, step=1, limit=4
    $region2: #{tpu_custom_call.1} parent=1 // loop_pre_header
      _
    $region3: #{tpu_custom_call.1} parent=1 // loop_header
      %s17 = sphi 0, %s21
      %p18 = scmp.ge.s32.totalorder %s17, 4
      %s24 = sphi 0, %s36
      %s25 = sphi 0, %s32
      %s26 = sphi 0, %s24
      %s27 = sphi 0, %s25
      %s28 = sphi 0, %s26
      %s29 = sphi 0, %s27
      %s41 = sphi 0, %s43
      %s44 = sphi 0, %s41
      %s45 = sphi 0, %s44
      %s61 = sphi 0, %s45
      %s65 = sphi 0, %s65
      %s67 = sphi 0, %s65
      %s68 = sphi 0, %s67
      %s82 = sphi 0, %s68
      %s86 = sphi 0, %s86
      %s88 = sphi 0, %s86
      %s89 = sphi 0, %s88
      %s103 = sphi 0, %s89
      %s107 = sphi 0, %s107
      %s109 = sphi 0, %s107
      %s110 = sphi 0, %s109
      %s124 = sphi 0, %s110
      %s128 = sphi 0, %s128
      %s130 = sphi 0, %s128
      %s131 = sphi 0, %s130
      %s145 = sphi 0, %s131
      %s153 = sphi 0, %s155
      %s156 = sphi 0, %s153
      %s157 = sphi 0, %s156
      %s173 = sphi 0, %s157
    $region4: #{tpu_custom_call.1} parent=1 // loop_header_branch
      %20 = sbr.rel (%p18) target = $region8
    $region5: #{tpu_custom_call.1} parent=1 // loop_body
      %s22 = ssub.s32 %s17, 1
      %s23 = ssub.s32 %s17, 2
      %s30 = sadd.s32 1, %s25
      %p31 = scmp.ge.s32.totalorder %s30, 1
      %s32 = scalar_select %p31, 0, %s30
      %s33 = sadd.s32 1, %s24
      %s34 = scalar_select %p31, %s33, %s24
      %p35 = scmp.ge.s32.totalorder %s34, 2
      %s36 = scalar_select %p35, 0, %s34
      %s37 = ssub.s32 %s24, %s36
      %s38 = ssub.s32 %s25, %s32
      %s39 = sor.u32 %s37, %s38
      %p40 = scmp.eq.s32.totalorder %s39, 0
      %s42 = sadd.s32 %s41, 1
      %s43 = scalar_select %p40, %s41, %s42
      %p46 = pneg %p40
      %p47 = scmp.eq.s32.totalorder %s17, 1
      %p48 = por %p46, %p47
      %p49 = scmp.ne.s32.totalorder %s41, %s44
      %p50 = scmp.eq.s32.totalorder %s17, 0
      %p51 = por %p49, %p50
      %p52 = scmp.ne.s32.totalorder %s41, %s44
      %p53 = scmp.eq.s32.totalorder %s22, 1
      %p54 = por %p52, %p53
      %p55 = scmp.ne.s32.totalorder %s44, %s45
      %p56 = scmp.eq.s32.totalorder %s22, 0
      %p57 = por %p55, %p56
      %p58 = scmp.ne.s32.totalorder %s44, %s45
      %p59 = scmp.eq.s32.totalorder %s23, 1
      %p60 = por %p58, %p59
      %p62 = scmp.ne.s32.totalorder %s45, %s61
      %p63 = scmp.eq.s32.totalorder %s23, 0
      %p64 = por %p62, %p63
      %s66 = sadd.s32 %s65, 1
      %p69 = scmp.eq.s32.totalorder %s17, 1
      %p70 = scmp.ne.s32.totalorder %s65, %s67
      %p71 = scmp.eq.s32.totalorder %s17, 0
      %p72 = por %p70, %p71
      %p73 = scmp.ne.s32.totalorder %s65, %s67
      %p74 = scmp.eq.s32.totalorder %s22, 1
      %p75 = por %p73, %p74
      %p76 = scmp.ne.s32.totalorder %s67, %s68
      %p77 = scmp.eq.s32.totalorder %s22, 0
      %p78 = por %p76, %p77
      %p79 = scmp.ne.s32.totalorder %s67, %s68
      %p80 = scmp.eq.s32.totalorder %s23, 1
      %p81 = por %p79, %p80
      %p83 = scmp.ne.s32.totalorder %s68, %s82
      %p84 = scmp.eq.s32.totalorder %s23, 0
      %p85 = por %p83, %p84
      %s87 = sadd.s32 %s86, 1
      %p90 = scmp.eq.s32.totalorder %s17, 1
      %p91 = scmp.ne.s32.totalorder %s86, %s88
      %p92 = scmp.eq.s32.totalorder %s17, 0
      %p93 = por %p91, %p92
      %p94 = scmp.ne.s32.totalorder %s86, %s88
      %p95 = scmp.eq.s32.totalorder %s22, 1
      %p96 = por %p94, %p95
      %p97 = scmp.ne.s32.totalorder %s88, %s89
      %p98 = scmp.eq.s32.totalorder %s22, 0
      %p99 = por %p97, %p98
      %p100 = scmp.ne.s32.totalorder %s88, %s89
      %p101 = scmp.eq.s32.totalorder %s23, 1
      %p102 = por %p100, %p101
      %p104 = scmp.ne.s32.totalorder %s89, %s103
      %p105 = scmp.eq.s32.totalorder %s23, 0
      %p106 = por %p104, %p105
      %s108 = sadd.s32 %s107, 1
      %p111 = scmp.eq.s32.totalorder %s17, 1
      %p112 = scmp.ne.s32.totalorder %s107, %s109
      %p113 = scmp.eq.s32.totalorder %s17, 0
      %p114 = por %p112, %p113
      %p115 = scmp.ne.s32.totalorder %s107, %s109
      %p116 = scmp.eq.s32.totalorder %s22, 1
      %p117 = por %p115, %p116
      %p118 = scmp.ne.s32.totalorder %s109, %s110
      %p119 = scmp.eq.s32.totalorder %s22, 0
      %p120 = por %p118, %p119
      %p121 = scmp.ne.s32.totalorder %s109, %s110
      %p122 = scmp.eq.s32.totalorder %s23, 1
      %p123 = por %p121, %p122
      %p125 = scmp.ne.s32.totalorder %s110, %s124
      %p126 = scmp.eq.s32.totalorder %s23, 0
      %p127 = por %p125, %p126
      %s129 = sadd.s32 %s128, 1
      %p132 = scmp.eq.s32.totalorder %s17, 1
      %p133 = scmp.ne.s32.totalorder %s128, %s130
      %p134 = scmp.eq.s32.totalorder %s17, 0
      %p135 = por %p133, %p134
      %p136 = scmp.ne.s32.totalorder %s128, %s130
      %p137 = scmp.eq.s32.totalorder %s22, 1
      %p138 = por %p136, %p137
      %p139 = scmp.ne.s32.totalorder %s130, %s131
      %p140 = scmp.eq.s32.totalorder %s22, 0
      %p141 = por %p139, %p140
      %p142 = scmp.ne.s32.totalorder %s130, %s131
      %p143 = scmp.eq.s32.totalorder %s23, 1
      %p144 = por %p142, %p143
      %p146 = scmp.ne.s32.totalorder %s131, %s145
      %p147 = scmp.eq.s32.totalorder %s23, 0
      %p148 = por %p146, %p147
      %s149 = ssub.s32 %s24, %s36
      %s150 = ssub.s32 %s25, %s32
      %s151 = sor.u32 %s149, %s150
      %p152 = scmp.eq.s32.totalorder %s151, 0
      %s154 = sadd.s32 %s153, 1
      %s155 = scalar_select %p152, %s153, %s154
      %p158 = pneg %p152
      %p159 = scmp.eq.s32.totalorder %s17, 1
      %p160 = por %p158, %p159
      %p161 = scmp.ne.s32.totalorder %s153, %s156
      %p162 = scmp.eq.s32.totalorder %s17, 0
      %p163 = por %p161, %p162
      %p164 = scmp.ne.s32.totalorder %s153, %s156
      %p165 = scmp.eq.s32.totalorder %s22, 1
      %p166 = por %p164, %p165
      %p167 = scmp.ne.s32.totalorder %s156, %s157
      %p168 = scmp.eq.s32.totalorder %s22, 0
      %p169 = por %p167, %p168
      %p170 = scmp.ne.s32.totalorder %s156, %s157
      %p171 = scmp.eq.s32.totalorder %s23, 1
      %p172 = por %p170, %p171
      %p174 = scmp.ne.s32.totalorder %s157, %s173
      %p175 = scmp.eq.s32.totalorder %s23, 0
      %p176 = por %p174, %p175
      %p177 = scmp.le.s32.totalorder 1, %s17
      %p178 = scmp.lt.s32.totalorder %s17, 3
      %p179 = pnand %p177, %p178
      %p180 = pneg %p179
      // Predicated region
      $region9: #{tpu_custom_call.1} parent=5 // pred_check
        _
      $region10: #{tpu_custom_call.1} parent=5 // pred_check_branch
        %182 = sbr.rel (%p179) target = $region12
      $region11: #{tpu_custom_call.1} parent=5 // pred_region
        %s183 = ssub.s32 %s17, 1
        // Predicated region
        $region13: #{tpu_custom_call.1} parent=11 // pred_check
          %p184 = pneg %p78
        $region14: #{tpu_custom_call.1} parent=11 // pred_check_branch
          %186 = sbr.rel (%p184) target = $region16
        $region15: #{tpu_custom_call.1} parent=11 // pred_region
          _
        $region16: #{tpu_custom_call.1} parent=11 // pred_fallthru
          _
        // Predicated region
        $region17: #{tpu_custom_call.1} parent=11 // pred_check
          %p187 = pneg %p99
        $region18: #{tpu_custom_call.1} parent=11 // pred_check_branch
          %189 = sbr.rel (%p187) target = $region20
        $region19: #{tpu_custom_call.1} parent=11 // pred_region
          _
        $region20: #{tpu_custom_call.1} parent=11 // pred_fallthru
          _
        // Predicated region
        $region21: #{tpu_custom_call.1} parent=11 // pred_check
          %p190 = pneg %p120
        $region22: #{tpu_custom_call.1} parent=11 // pred_check_branch
          %192 = sbr.rel (%p190) target = $region24
        $region23: #{tpu_custom_call.1} parent=11 // pred_region
          _
        $region24: #{tpu_custom_call.1} parent=11 // pred_fallthru
          _
        // Predicated region
        $region25: #{tpu_custom_call.1} parent=11 // pred_check
          %p193 = pneg %p141
        $region26: #{tpu_custom_call.1} parent=11 // pred_check_branch
          %195 = sbr.rel (%p193) target = $region28
        $region27: #{tpu_custom_call.1} parent=11 // pred_region
          _
        $region28: #{tpu_custom_call.1} parent=11 // pred_fallthru
          _
      $region12: #{tpu_custom_call.1} parent=5 // pred_fallthru
        _
      %p196 = scmp.lt.s32.totalorder %s17, 2
      // Predicated region
      $region29: #{tpu_custom_call.1} parent=5 // pred_check
        %p197 = pneg %p196
      $region30: #{tpu_custom_call.1} parent=5 // pred_check_branch
        %199 = sbr.rel (%p197) target = $region32
      $region31: #{tpu_custom_call.1} parent=5 // pred_region
        // Predicated region
        $region33: #{tpu_custom_call.1} parent=31 // pred_check
          %p200 = pneg %p51
        $region34: #{tpu_custom_call.1} parent=31 // pred_check_branch
          %202 = sbr.rel (%p200) target = $region36
        $region35: #{tpu_custom_call.1} parent=31 // pred_region
          %s203 = sand.u32 %s41, 1
          %s204 = scalar_lea.sflag [#allocation3], %s203
          %s205 = sand.u32 %s41, 1
          %s206 = smul.addr %s205, 1024
          %s207 = scalar_lea.vmem [#allocation2], %s206
          %s208 = smul.u32 8, %s25
          %210 = vsyncadd %s204, 0
          %s211 = smul.addr %s24, 128
          %s212 = sadd.s32 %s208, %s211
          %s213 = smul.addr %s212, 8
          %s214 = scalar_lea.hbm %s0, %s213
          %s215 = sshll.u32 %s214, 4
          %s216 = int_to_ptr.hbm [resolvable:$true] %s215
          %s217 = sshll.u32 %s207, 4
          %s218 = int_to_ptr.vmem [resolvable:$true] %s217
          %223 = dma.hbm_to_vmem [thread:$0]  %s216, 16384, %s218, %s204, 1024, 1024, 64
        $region36: #{tpu_custom_call.1} parent=31 // pred_fallthru
          _
      $region32: #{tpu_custom_call.1} parent=5 // pred_fallthru
        _
      %p224 = scmp.le.s32.totalorder 1, %s17
      %p225 = scmp.lt.s32.totalorder %s17, 3
      %p226 = pnand %p224, %p225
      %p227 = pneg %p226
      // Predicated region
      $region37: #{tpu_custom_call.1} parent=5 // pred_check
        _
      $region38: #{tpu_custom_call.1} parent=5 // pred_check_branch
        %229 = sbr.rel (%p226) target = $region40
      $region39: #{tpu_custom_call.1} parent=5 // pred_region
        %s230 = ssub.s32 %s17, 1
        %s231 = sand.u32 %s44, 1
        %s232 = scalar_lea.sflag [#allocation3], %s231
        %s233 = sand.u32 %s44, 1
        %s234 = smul.addr %s233, 1024
        %s235 = scalar_lea.vmem [#allocation2], %s234
        // Predicated region
        $region41: #{tpu_custom_call.1} parent=39 // pred_check
          %p236 = pneg %p57
        $region42: #{tpu_custom_call.1} parent=39 // pred_check_branch
          %238 = sbr.rel (%p236) target = $region44
        $region43: #{tpu_custom_call.1} parent=39 // pred_region
          %240 = dma.done %s232, 16384
        $region44: #{tpu_custom_call.1} parent=39 // pred_fallthru
          _
        %s241 = sand.u32 %s44, 1
        %s242 = scalar_lea.sflag [#allocation3], %s241
        %s243 = sand.u32 %s44, 1
        %s244 = smul.addr %s243, 1024
        %s245 = scalar_lea.vmem [#allocation2], %s244
        %p246 = pneg %p57
        %p247 = pneg %p54
        %p248 = pneg %p78
        %p249 = pneg %p75
        %p250 = pneg %p99
        %p251 = pneg %p96
        %p252 = pneg %p120
        %p253 = pneg %p117
        %p254 = pneg %p141
        %p255 = pneg %p138
        %p256 = pneg %p169
        %p257 = pneg %p166
        %s258 = sand.u32 %s156, 1
        %s259 = scalar_lea.sflag [#allocation4], %s258
        %s260 = sand.u32 %s156, 1
        %s261 = smul.addr %s260, 1024
        %s262 = scalar_lea.vmem [#allocation5], %s261
        %s263 = smul.u32 8, %s27
        %s264 = smul.u32 8, %s27
        %v265 = vld [vmem:[%s235] sm:$0xff]
        %v266 = vld [vmem:[%s235 + $0x8] sm:$0xff]
        %v267 = vld [vmem:[%s235 + $0x10] sm:$0xff]
        %v268 = vld [vmem:[%s235 + $0x18] sm:$0xff]
        %v269 = vld [vmem:[%s235 + $0x20] sm:$0xff]
        %v270 = vld [vmem:[%s235 + $0x28] sm:$0xff]
        %v271 = vld [vmem:[%s235 + $0x30] sm:$0xff]
        %v272 = vld [vmem:[%s235 + $0x38] sm:$0xff]
        %v273 = vld [vmem:[%s235 + $0x40] sm:$0xff]
        %v274 = vld [vmem:[%s235 + $0x48] sm:$0xff]
        %v275 = vld [vmem:[%s235 + $0x50] sm:$0xff]
        %v276 = vld [vmem:[%s235 + $0x58] sm:$0xff]
        %v277 = vld [vmem:[%s235 + $0x60] sm:$0xff]
        %v278 = vld [vmem:[%s235 + $0x68] sm:$0xff]
        %v279 = vld [vmem:[%s235 + $0x70] sm:$0xff]
        %v280 = vld [vmem:[%s235 + $0x78] sm:$0xff]
        %v281 = vld [vmem:[%s235 + $0x80] sm:$0xff]
        %v282 = vld [vmem:[%s235 + $0x88] sm:$0xff]
        %v283 = vld [vmem:[%s235 + $0x90] sm:$0xff]
        %v284 = vld [vmem:[%s235 + $0x98] sm:$0xff]
        %v285 = vld [vmem:[%s235 + $0xa0] sm:$0xff]
        %v286 = vld [vmem:[%s235 + $0xa8] sm:$0xff]
        %v287 = vld [vmem:[%s235 + $0xb0] sm:$0xff]
        %v288 = vld [vmem:[%s235 + $0xb8] sm:$0xff]
        %v289 = vld [vmem:[%s235 + $0xc0] sm:$0xff]
        %v290 = vld [vmem:[%s235 + $0xc8] sm:$0xff]
        %v291 = vld [vmem:[%s235 + $0xd0] sm:$0xff]
        %v292 = vld [vmem:[%s235 + $0xd8] sm:$0xff]
        %v293 = vld [vmem:[%s235 + $0xe0] sm:$0xff]
        %v294 = vld [vmem:[%s235 + $0xe8] sm:$0xff]
        %v295 = vld [vmem:[%s235 + $0xf0] sm:$0xff]
        %v296 = vld [vmem:[%s235 + $0xf8] sm:$0xff]
        %v297 = vld [vmem:[%s235 + $0x100] sm:$0xff]
        %v298 = vld [vmem:[%s235 + $0x108] sm:$0xff]
        %v299 = vld [vmem:[%s235 + $0x110] sm:$0xff]
        %v300 = vld [vmem:[%s235 + $0x118] sm:$0xff]
        %v301 = vld [vmem:[%s235 + $0x120] sm:$0xff]
        %v302 = vld [vmem:[%s235 + $0x128] sm:$0xff]
        %v303 = vld [vmem:[%s235 + $0x130] sm:$0xff]
        %v304 = vld [vmem:[%s235 + $0x138] sm:$0xff]
        %v305 = vld [vmem:[%s235 + $0x140] sm:$0xff]
        %v306 = vld [vmem:[%s235 + $0x148] sm:$0xff]
        %v307 = vld [vmem:[%s235 + $0x150] sm:$0xff]
        %v308 = vld [vmem:[%s235 + $0x158] sm:$0xff]
        %v309 = vld [vmem:[%s235 + $0x160] sm:$0xff]
        %v310 = vld [vmem:[%s235 + $0x168] sm:$0xff]
        %v311 = vld [vmem:[%s235 + $0x170] sm:$0xff]
        %v312 = vld [vmem:[%s235 + $0x178] sm:$0xff]
        %v313 = vld [vmem:[%s235 + $0x180] sm:$0xff]
        %v314 = vld [vmem:[%s235 + $0x188] sm:$0xff]
        %v315 = vld [vmem:[%s235 + $0x190] sm:$0xff]
        %v316 = vld [vmem:[%s235 + $0x198] sm:$0xff]
        %v317 = vld [vmem:[%s235 + $0x1a0] sm:$0xff]
        %v318 = vld [vmem:[%s235 + $0x1a8] sm:$0xff]
        %v319 = vld [vmem:[%s235 + $0x1b0] sm:$0xff]
        %v320 = vld [vmem:[%s235 + $0x1b8] sm:$0xff]
        %v321 = vld [vmem:[%s235 + $0x1c0] sm:$0xff]
        %v322 = vld [vmem:[%s235 + $0x1c8] sm:$0xff]
        %v323 = vld [vmem:[%s235 + $0x1d0] sm:$0xff]
        %v324 = vld [vmem:[%s235 + $0x1d8] sm:$0xff]
        %v325 = vld [vmem:[%s235 + $0x1e0] sm:$0xff]
        %v326 = vld [vmem:[%s235 + $0x1e8] sm:$0xff]
        %v327 = vld [vmem:[%s235 + $0x1f0] sm:$0xff]
        %v328 = vld [vmem:[%s235 + $0x1f8] sm:$0xff]
        %v329 = vld [vmem:[%s235 + $0x200] sm:$0xff]
        %v330 = vld [vmem:[%s235 + $0x208] sm:$0xff]
        %v331 = vld [vmem:[%s235 + $0x210] sm:$0xff]
        %v332 = vld [vmem:[%s235 + $0x218] sm:$0xff]
        %v333 = vld [vmem:[%s235 + $0x220] sm:$0xff]
        %v334 = vld [vmem:[%s235 + $0x228] sm:$0xff]
        %v335 = vld [vmem:[%s235 + $0x230] sm:$0xff]
        %v336 = vld [vmem:[%s235 + $0x238] sm:$0xff]
        %v337 = vld [vmem:[%s235 + $0x240] sm:$0xff]
        %v338 = vld [vmem:[%s235 + $0x248] sm:$0xff]
        %v339 = vld [vmem:[%s235 + $0x250] sm:$0xff]
        %v340 = vld [vmem:[%s235 + $0x258] sm:$0xff]
        %v341 = vld [vmem:[%s235 + $0x260] sm:$0xff]
        %v342 = vld [vmem:[%s235 + $0x268] sm:$0xff]
        %v343 = vld [vmem:[%s235 + $0x270] sm:$0xff]
        %v344 = vld [vmem:[%s235 + $0x278] sm:$0xff]
        %v345 = vld [vmem:[%s235 + $0x280] sm:$0xff]
        %v346 = vld [vmem:[%s235 + $0x288] sm:$0xff]
        %v347 = vld [vmem:[%s235 + $0x290] sm:$0xff]
        %v348 = vld [vmem:[%s235 + $0x298] sm:$0xff]
        %v349 = vld [vmem:[%s235 + $0x2a0] sm:$0xff]
        %v350 = vld [vmem:[%s235 + $0x2a8] sm:$0xff]
        %v351 = vld [vmem:[%s235 + $0x2b0] sm:$0xff]
        %v352 = vld [vmem:[%s235 + $0x2b8] sm:$0xff]
        %v353 = vld [vmem:[%s235 + $0x2c0] sm:$0xff]
        %v354 = vld [vmem:[%s235 + $0x2c8] sm:$0xff]
        %v355 = vld [vmem:[%s235 + $0x2d0] sm:$0xff]
        %v356 = vld [vmem:[%s235 + $0x2d8] sm:$0xff]
        %v357 = vld [vmem:[%s235 + $0x2e0] sm:$0xff]
        %v358 = vld [vmem:[%s235 + $0x2e8] sm:$0xff]
        %v359 = vld [vmem:[%s235 + $0x2f0] sm:$0xff]
        %v360 = vld [vmem:[%s235 + $0x2f8] sm:$0xff]
        %v361 = vld [vmem:[%s235 + $0x300] sm:$0xff]
        %v362 = vld [vmem:[%s235 + $0x308] sm:$0xff]
        %v363 = vld [vmem:[%s235 + $0x310] sm:$0xff]
        %v364 = vld [vmem:[%s235 + $0x318] sm:$0xff]
        %v365 = vld [vmem:[%s235 + $0x320] sm:$0xff]
        %v366 = vld [vmem:[%s235 + $0x328] sm:$0xff]
        %v367 = vld [vmem:[%s235 + $0x330] sm:$0xff]
        %v368 = vld [vmem:[%s235 + $0x338] sm:$0xff]
        %v369 = vld [vmem:[%s235 + $0x340] sm:$0xff]
        %v370 = vld [vmem:[%s235 + $0x348] sm:$0xff]
        %v371 = vld [vmem:[%s235 + $0x350] sm:$0xff]
        %v372 = vld [vmem:[%s235 + $0x358] sm:$0xff]
        %v373 = vld [vmem:[%s235 + $0x360] sm:$0xff]
        %v374 = vld [vmem:[%s235 + $0x368] sm:$0xff]
        %v375 = vld [vmem:[%s235 + $0x370] sm:$0xff]
        %v376 = vld [vmem:[%s235 + $0x378] sm:$0xff]
        %v377 = vld [vmem:[%s235 + $0x380] sm:$0xff]
        %v378 = vld [vmem:[%s235 + $0x388] sm:$0xff]
        %v379 = vld [vmem:[%s235 + $0x390] sm:$0xff]
        %v380 = vld [vmem:[%s235 + $0x398] sm:$0xff]
        %v381 = vld [vmem:[%s235 + $0x3a0] sm:$0xff]
        %v382 = vld [vmem:[%s235 + $0x3a8] sm:$0xff]
        %v383 = vld [vmem:[%s235 + $0x3b0] sm:$0xff]
        %v384 = vld [vmem:[%s235 + $0x3b8] sm:$0xff]
        %v385 = vld [vmem:[%s235 + $0x3c0] sm:$0xff]
        %v386 = vld [vmem:[%s235 + $0x3c8] sm:$0xff]
        %v387 = vld [vmem:[%s235 + $0x3d0] sm:$0xff]
        %v388 = vld [vmem:[%s235 + $0x3d8] sm:$0xff]
        %v389 = vld [vmem:[%s235 + $0x3e0] sm:$0xff]
        %v390 = vld [vmem:[%s235 + $0x3e8] sm:$0xff]
        %v391 = vld [vmem:[%s235 + $0x3f0] sm:$0xff]
        %v392 = vld [vmem:[%s235 + $0x3f8] sm:$0xff]
        %v393 = vpack.c.bf16 %v273, %v265
        %v394 = vpack.c.bf16 %v274, %v266
        %v395 = vpack.c.bf16 %v275, %v267
        %v396 = vpack.c.bf16 %v276, %v268
        %v397 = vpack.c.bf16 %v277, %v269
        %v398 = vpack.c.bf16 %v278, %v270
        %v399 = vpack.c.bf16 %v279, %v271
        %v400 = vpack.c.bf16 %v280, %v272
        %v401 = vpack.c.bf16 %v289, %v281
        %v402 = vpack.c.bf16 %v290, %v282
        %v403 = vpack.c.bf16 %v291, %v283
        %v404 = vpack.c.bf16 %v292, %v284
        %v405 = vpack.c.bf16 %v293, %v285
        %v406 = vpack.c.bf16 %v294, %v286
        %v407 = vpack.c.bf16 %v295, %v287
        %v408 = vpack.c.bf16 %v296, %v288
        %v409 = vpack.c.bf16 %v305, %v297
        %v410 = vpack.c.bf16 %v306, %v298
        %v411 = vpack.c.bf16 %v307, %v299
        %v412 = vpack.c.bf16 %v308, %v300
        %v413 = vpack.c.bf16 %v309, %v301
        %v414 = vpack.c.bf16 %v310, %v302
        %v415 = vpack.c.bf16 %v311, %v303
        %v416 = vpack.c.bf16 %v312, %v304
        %v417 = vpack.c.bf16 %v321, %v313
        %v418 = vpack.c.bf16 %v322, %v314
        %v419 = vpack.c.bf16 %v323, %v315
        %v420 = vpack.c.bf16 %v324, %v316
        %v421 = vpack.c.bf16 %v325, %v317
        %v422 = vpack.c.bf16 %v326, %v318
        %v423 = vpack.c.bf16 %v327, %v319
        %v424 = vpack.c.bf16 %v328, %v320
        %v425 = vpack.c.bf16 %v337, %v329
        %v426 = vpack.c.bf16 %v338, %v330
        %v427 = vpack.c.bf16 %v339, %v331
        %v428 = vpack.c.bf16 %v340, %v332
        %v429 = vpack.c.bf16 %v341, %v333
        %v430 = vpack.c.bf16 %v342, %v334
        %v431 = vpack.c.bf16 %v343, %v335
        %v432 = vpack.c.bf16 %v344, %v336
        %v433 = vpack.c.bf16 %v353, %v345
        %v434 = vpack.c.bf16 %v354, %v346
        %v435 = vpack.c.bf16 %v355, %v347
        %v436 = vpack.c.bf16 %v356, %v348
        %v437 = vpack.c.bf16 %v357, %v349
        %v438 = vpack.c.bf16 %v358, %v350
        %v439 = vpack.c.bf16 %v359, %v351
        %v440 = vpack.c.bf16 %v360, %v352
        %v441 = vpack.c.bf16 %v369, %v361
        %v442 = vpack.c.bf16 %v370, %v362
        %v443 = vpack.c.bf16 %v371, %v363
        %v444 = vpack.c.bf16 %v372, %v364
        %v445 = vpack.c.bf16 %v373, %v365
        %v446 = vpack.c.bf16 %v374, %v366
        %v447 = vpack.c.bf16 %v375, %v367
        %v448 = vpack.c.bf16 %v376, %v368
        %v449 = vpack.c.bf16 %v385, %v377
        %v450 = vpack.c.bf16 %v386, %v378
        %v451 = vpack.c.bf16 %v387, %v379
        %v452 = vpack.c.bf16 %v388, %v380
        %v453 = vpack.c.bf16 %v389, %v381
        %v454 = vpack.c.bf16 %v390, %v382
        %v455 = vpack.c.bf16 %v391, %v383
        %v456 = vpack.c.bf16 %v392, %v384
        %v457 = vld [vmem:[%s1] sm:$0xf]
        %v458 = vld [vmem:[%s1 + $0x4] sm:$0xf]
        %v459 = vld [vmem:[%s1 + $0x8] sm:$0xf]
        %v460 = vld [vmem:[%s1 + $0xc] sm:$0xf]
        %v461 = vld [vmem:[%s1 + $0x10] sm:$0xf]
        %v462 = vld [vmem:[%s1 + $0x14] sm:$0xf]
        %v463 = vld [vmem:[%s1 + $0x18] sm:$0xf]
        %v464 = vld [vmem:[%s1 + $0x1c] sm:$0xf]
        %v465 = vld [vmem:[%s1 + $0x20] sm:$0xf]
        %v466 = vld [vmem:[%s1 + $0x24] sm:$0xf]
        %v467 = vld [vmem:[%s1 + $0x28] sm:$0xf]
        %v468 = vld [vmem:[%s1 + $0x2c] sm:$0xf]
        %v469 = vld [vmem:[%s1 + $0x30] sm:$0xf]
        %v470 = vld [vmem:[%s1 + $0x34] sm:$0xf]
        %v471 = vld [vmem:[%s1 + $0x38] sm:$0xf]
        %v472 = vld [vmem:[%s1 + $0x3c] sm:$0xf]
        %v473 = vld [vmem:[%s2] sm:$0xff]
        %v474 = vld [vmem:[%s2 + $0x8] sm:$0xff]
        %v475 = vld [vmem:[%s2 + $0x10] sm:$0xff]
        %v476 = vld [vmem:[%s2 + $0x18] sm:$0xff]
        %v477 = vld [vmem:[%s2 + $0x20] sm:$0xff]
        %v478 = vld [vmem:[%s2 + $0x28] sm:$0xff]
        %v479 = vld [vmem:[%s2 + $0x30] sm:$0xff]
        %v480 = vld [vmem:[%s2 + $0x38] sm:$0xff]
        %v481 = vld [vmem:[%s2 + $0x40] sm:$0xff]
        %v482 = vld [vmem:[%s2 + $0x48] sm:$0xff]
        %v483 = vld [vmem:[%s2 + $0x50] sm:$0xff]
        %v484 = vld [vmem:[%s2 + $0x58] sm:$0xff]
        %v485 = vld [vmem:[%s2 + $0x60] sm:$0xff]
        %v486 = vld [vmem:[%s2 + $0x68] sm:$0xff]
        %v487 = vld [vmem:[%s2 + $0x70] sm:$0xff]
        %v488 = vld [vmem:[%s2 + $0x78] sm:$0xff]
        %490 = vset.pattern.permute.xlu0 0
        %491 = vperm.xlu0 %490, %v473
        %v492 = vpop.permute.xlu0 %491
        %495 = vset.pattern.permute.xlu0 0
        %496 = vperm.xlu0 %495, %v474
        %v497 = vpop.permute.xlu0 %496
        %500 = vset.pattern.permute.xlu0 0
        %501 = vperm.xlu0 %500, %v475
        %v502 = vpop.permute.xlu0 %501
        %505 = vset.pattern.permute.xlu0 0
        %506 = vperm.xlu0 %505, %v476
        %v507 = vpop.permute.xlu0 %506
        %510 = vset.pattern.permute.xlu0 0
        %511 = vperm.xlu0 %510, %v477
        %v512 = vpop.permute.xlu0 %511
        %515 = vset.pattern.permute.xlu0 0
        %516 = vperm.xlu0 %515, %v478
        %v517 = vpop.permute.xlu0 %516
        %520 = vset.pattern.permute.xlu0 0
        %521 = vperm.xlu0 %520, %v479
        %v522 = vpop.permute.xlu0 %521
        %525 = vset.pattern.permute.xlu0 0
        %526 = vperm.xlu0 %525, %v480
        %v527 = vpop.permute.xlu0 %526
        %530 = vset.pattern.permute.xlu0 0
        %531 = vperm.xlu0 %530, %v481
        %v532 = vpop.permute.xlu0 %531
        %535 = vset.pattern.permute.xlu0 0
        %536 = vperm.xlu0 %535, %v482
        %v537 = vpop.permute.xlu0 %536
        %540 = vset.pattern.permute.xlu0 0
        %541 = vperm.xlu0 %540, %v483
        %v542 = vpop.permute.xlu0 %541
        %545 = vset.pattern.permute.xlu0 0
        %546 = vperm.xlu0 %545, %v484
        %v547 = vpop.permute.xlu0 %546
        %550 = vset.pattern.permute.xlu0 0
        %551 = vperm.xlu0 %550, %v485
        %v552 = vpop.permute.xlu0 %551
        %555 = vset.pattern.permute.xlu0 0
        %556 = vperm.xlu0 %555, %v486
        %v557 = vpop.permute.xlu0 %556
        %560 = vset.pattern.permute.xlu0 0
        %561 = vperm.xlu0 %560, %v487
        %v562 = vpop.permute.xlu0 %561
        %565 = vset.pattern.permute.xlu0 0
        %566 = vperm.xlu0 %565, %v488
        %v567 = vpop.permute.xlu0 %566
        %v585 = vunpack.c.l.b16 %v457
        %v586 = vunpack.c.l.b16 %v458
        %v587 = vunpack.c.l.b16 %v459
        %v588 = vunpack.c.l.b16 %v460
        %v589 = vunpack.c.l.b16 %v461
        %v590 = vunpack.c.l.b16 %v462
        %v591 = vunpack.c.l.b16 %v463
        %v592 = vunpack.c.l.b16 %v464
        %v593 = vunpack.c.l.b16 %v465
        %v594 = vunpack.c.l.b16 %v466
        %v595 = vunpack.c.l.b16 %v467
        %v596 = vunpack.c.l.b16 %v468
        %v597 = vunpack.c.l.b16 %v469
        %v598 = vunpack.c.l.b16 %v470
        %v599 = vunpack.c.l.b16 %v471
        %v600 = vunpack.c.l.b16 %v472
        %v601 = vpack.c.b16 %v586, %v585
        %v602 = vpack.c.b16 %v588, %v587
        %v603 = vpack.c.b16 %v590, %v589
        %v604 = vpack.c.b16 %v592, %v591
        %v605 = vpack.c.b16 %v594, %v593
        %v606 = vpack.c.b16 %v596, %v595
        %v607 = vpack.c.b16 %v598, %v597
        %v608 = vpack.c.b16 %v600, %v599
        %617 = vmatpush.bf16.msra.mxu0 %v449
        %618 = vmatpush.bf16.msra.mxu0 %v441
        %619 = vmatpush.bf16.msra.mxu0 %v433
        %620 = vmatpush.bf16.msra.mxu0 %v425
        %621 = vmatpush.bf16.msra.mxu0 %v417
        %622 = vmatpush.bf16.msra.mxu0 %v409
        %623 = vmatpush.bf16.msra.mxu0 %v401
        %624 = vmatpush.bf16.msra.mxu0 %v393
        %625 = vmatmul.bf16.gmra.mxu0 %v601
        %v626 = vpop.f32.mrf.mxu0
        %v627 = vadd.f32 %v492, %v626
        %v628 = vpop.f32.mrf.mxu0
        %v629 = vadd.f32 %v497, %v628
        %630 = vmatmul.bf16.gmra.mxu0 %v602
        %v631 = vpop.f32.mrf.mxu0
        %v632 = vadd.f32 %v502, %v631
        %v633 = vpop.f32.mrf.mxu0
        %v634 = vadd.f32 %v507, %v633
        %635 = vmatmul.bf16.gmra.mxu0 %v603
        %v636 = vpop.f32.mrf.mxu0
        %v637 = vadd.f32 %v512, %v636
        %v638 = vpop.f32.mrf.mxu0
        %v639 = vadd.f32 %v517, %v638
        %640 = vmatmul.bf16.gmra.mxu0 %v604
        %v641 = vpop.f32.mrf.mxu0
        %v642 = vadd.f32 %v522, %v641
        %v643 = vpop.f32.mrf.mxu0
        %v644 = vadd.f32 %v527, %v643
        %645 = vmatmul.bf16.gmra.mxu0 %v605
        %v646 = vpop.f32.mrf.mxu0
        %v647 = vadd.f32 %v532, %v646
        %v648 = vpop.f32.mrf.mxu0
        %v649 = vadd.f32 %v537, %v648
        %650 = vmatmul.bf16.gmra.mxu0 %v606
        %v651 = vpop.f32.mrf.mxu0
        %v652 = vadd.f32 %v542, %v651
        %v653 = vpop.f32.mrf.mxu0
        %v654 = vadd.f32 %v547, %v653
        %655 = vmatmul.bf16.gmra.mxu0 %v607
        %v656 = vpop.f32.mrf.mxu0
        %v657 = vadd.f32 %v552, %v656
        %v658 = vpop.f32.mrf.mxu0
        %v659 = vadd.f32 %v557, %v658
        %660 = vmatmul.bf16.gmra.mxu0 %v608
        %v661 = vpop.f32.mrf.mxu0
        %v662 = vadd.f32 %v562, %v661
        %v663 = vpop.f32.mrf.mxu0
        %v664 = vadd.f32 %v567, %v663
        %665 = vdwg.mxu0
        %666 = vmatpush.bf16.msra.mxu0 %v450
        %667 = vmatpush.bf16.msra.mxu0 %v442
        %668 = vmatpush.bf16.msra.mxu0 %v434
        %669 = vmatpush.bf16.msra.mxu0 %v426
        %670 = vmatpush.bf16.msra.mxu0 %v418
        %671 = vmatpush.bf16.msra.mxu0 %v410
        %672 = vmatpush.bf16.msra.mxu0 %v402
        %673 = vmatpush.bf16.msra.mxu0 %v394
        %674 = vmatmul.bf16.gmra.mxu0 %v601
        %v675 = vpop.f32.mrf.mxu0
        %v676 = vadd.f32 %v492, %v675
        %v677 = vpop.f32.mrf.mxu0
        %v678 = vadd.f32 %v497, %v677
        %679 = vmatmul.bf16.gmra.mxu0 %v602
        %v680 = vpop.f32.mrf.mxu0
        %v681 = vadd.f32 %v502, %v680
        %v682 = vpop.f32.mrf.mxu0
        %v683 = vadd.f32 %v507, %v682
        %684 = vmatmul.bf16.gmra.mxu0 %v603
        %v685 = vpop.f32.mrf.mxu0
        %v686 = vadd.f32 %v512, %v685
        %v687 = vpop.f32.mrf.mxu0
        %v688 = vadd.f32 %v517, %v687
        %689 = vmatmul.bf16.gmra.mxu0 %v604
        %v690 = vpop.f32.mrf.mxu0
        %v691 = vadd.f32 %v522, %v690
        %v692 = vpop.f32.mrf.mxu0
        %v693 = vadd.f32 %v527, %v692
        %694 = vmatmul.bf16.gmra.mxu0 %v605
        %v695 = vpop.f32.mrf.mxu0
        %v696 = vadd.f32 %v532, %v695
        %v697 = vpop.f32.mrf.mxu0
        %v698 = vadd.f32 %v537, %v697
        %699 = vmatmul.bf16.gmra.mxu0 %v606
        %v700 = vpop.f32.mrf.mxu0
        %v701 = vadd.f32 %v542, %v700
        %v702 = vpop.f32.mrf.mxu0
        %v703 = vadd.f32 %v547, %v702
        %704 = vmatmul.bf16.gmra.mxu0 %v607
        %v705 = vpop.f32.mrf.mxu0
        %v706 = vadd.f32 %v552, %v705
        %v707 = vpop.f32.mrf.mxu0
        %v708 = vadd.f32 %v557, %v707
        %709 = vmatmul.bf16.gmra.mxu0 %v608
        %v710 = vpop.f32.mrf.mxu0
        %v711 = vadd.f32 %v562, %v710
        %v712 = vpop.f32.mrf.mxu0
        %v713 = vadd.f32 %v567, %v712
        %714 = vdwg.mxu0
        %715 = vmatpush.bf16.msra.mxu0 %v451
        %716 = vmatpush.bf16.msra.mxu0 %v443
        %717 = vmatpush.bf16.msra.mxu0 %v435
        %718 = vmatpush.bf16.msra.mxu0 %v427
        %719 = vmatpush.bf16.msra.mxu0 %v419
        %720 = vmatpush.bf16.msra.mxu0 %v411
        %721 = vmatpush.bf16.msra.mxu0 %v403
        %722 = vmatpush.bf16.msra.mxu0 %v395
        %723 = vmatmul.bf16.gmra.mxu0 %v601
        %v724 = vpop.f32.mrf.mxu0
        %v725 = vadd.f32 %v492, %v724
        %v726 = vpop.f32.mrf.mxu0
        %v727 = vadd.f32 %v497, %v726
        %728 = vmatmul.bf16.gmra.mxu0 %v602
        %v729 = vpop.f32.mrf.mxu0
        %v730 = vadd.f32 %v502, %v729
        %v731 = vpop.f32.mrf.mxu0
        %v732 = vadd.f32 %v507, %v731
        %733 = vmatmul.bf16.gmra.mxu0 %v603
        %v734 = vpop.f32.mrf.mxu0
        %v735 = vadd.f32 %v512, %v734
        %v736 = vpop.f32.mrf.mxu0
        %v737 = vadd.f32 %v517, %v736
        %738 = vmatmul.bf16.gmra.mxu0 %v604
        %v739 = vpop.f32.mrf.mxu0
        %v740 = vadd.f32 %v522, %v739
        %v741 = vpop.f32.mrf.mxu0
        %v742 = vadd.f32 %v527, %v741
        %743 = vmatmul.bf16.gmra.mxu0 %v605
        %v744 = vpop.f32.mrf.mxu0
        %v745 = vadd.f32 %v532, %v744
        %v746 = vpop.f32.mrf.mxu0
        %v747 = vadd.f32 %v537, %v746
        %748 = vmatmul.bf16.gmra.mxu0 %v606
        %v749 = vpop.f32.mrf.mxu0
        %v750 = vadd.f32 %v542, %v749
        %v751 = vpop.f32.mrf.mxu0
        %v752 = vadd.f32 %v547, %v751
        %753 = vmatmul.bf16.gmra.mxu0 %v607
        %v754 = vpop.f32.mrf.mxu0
        %v755 = vadd.f32 %v552, %v754
        %v756 = vpop.f32.mrf.mxu0
        %v757 = vadd.f32 %v557, %v756
        %758 = vmatmul.bf16.gmra.mxu0 %v608
        %v759 = vpop.f32.mrf.mxu0
        %v760 = vadd.f32 %v562, %v759
        %v761 = vpop.f32.mrf.mxu0
        %v762 = vadd.f32 %v567, %v761
        %763 = vdwg.mxu0
        %764 = vmatpush.bf16.msra.mxu0 %v452
        %765 = vmatpush.bf16.msra.mxu0 %v444
        %766 = vmatpush.bf16.msra.mxu0 %v436
        %767 = vmatpush.bf16.msra.mxu0 %v428
        %768 = vmatpush.bf16.msra.mxu0 %v420
        %769 = vmatpush.bf16.msra.mxu0 %v412
        %770 = vmatpush.bf16.msra.mxu0 %v404
        %771 = vmatpush.bf16.msra.mxu0 %v396
        %772 = vmatmul.bf16.gmra.mxu0 %v601
        %v773 = vpop.f32.mrf.mxu0
        %v774 = vadd.f32 %v492, %v773
        %v775 = vpop.f32.mrf.mxu0
        %v776 = vadd.f32 %v497, %v775
        %777 = vmatmul.bf16.gmra.mxu0 %v602
        %v778 = vpop.f32.mrf.mxu0
        %v779 = vadd.f32 %v502, %v778
        %v780 = vpop.f32.mrf.mxu0
        %v781 = vadd.f32 %v507, %v780
        %782 = vmatmul.bf16.gmra.mxu0 %v603
        %v783 = vpop.f32.mrf.mxu0
        %v784 = vadd.f32 %v512, %v783
        %v785 = vpop.f32.mrf.mxu0
        %v786 = vadd.f32 %v517, %v785
        %787 = vmatmul.bf16.gmra.mxu0 %v604
        %v788 = vpop.f32.mrf.mxu0
        %v789 = vadd.f32 %v522, %v788
        %v790 = vpop.f32.mrf.mxu0
        %v791 = vadd.f32 %v527, %v790
        %792 = vmatmul.bf16.gmra.mxu0 %v605
        %v793 = vpop.f32.mrf.mxu0
        %v794 = vadd.f32 %v532, %v793
        %v795 = vpop.f32.mrf.mxu0
        %v796 = vadd.f32 %v537, %v795
        %797 = vmatmul.bf16.gmra.mxu0 %v606
        %v798 = vpop.f32.mrf.mxu0
        %v799 = vadd.f32 %v542, %v798
        %v800 = vpop.f32.mrf.mxu0
        %v801 = vadd.f32 %v547, %v800
        %802 = vmatmul.bf16.gmra.mxu0 %v607
        %v803 = vpop.f32.mrf.mxu0
        %v804 = vadd.f32 %v552, %v803
        %v805 = vpop.f32.mrf.mxu0
        %v806 = vadd.f32 %v557, %v805
        %807 = vmatmul.bf16.gmra.mxu0 %v608
        %v808 = vpop.f32.mrf.mxu0
        %v809 = vadd.f32 %v562, %v808
        %v810 = vpop.f32.mrf.mxu0
        %v811 = vadd.f32 %v567, %v810
        %812 = vdwg.mxu0
        %813 = vmatpush.bf16.msra.mxu0 %v453
        %814 = vmatpush.bf16.msra.mxu0 %v445
        %815 = vmatpush.bf16.msra.mxu0 %v437
        %816 = vmatpush.bf16.msra.mxu0 %v429
        %817 = vmatpush.bf16.msra.mxu0 %v421
        %818 = vmatpush.bf16.msra.mxu0 %v413
        %819 = vmatpush.bf16.msra.mxu0 %v405
        %820 = vmatpush.bf16.msra.mxu0 %v397
        %821 = vmatmul.bf16.gmra.mxu0 %v601
        %v822 = vpop.f32.mrf.mxu0
        %v823 = vadd.f32 %v492, %v822
        %v824 = vpop.f32.mrf.mxu0
        %v825 = vadd.f32 %v497, %v824
        %826 = vmatmul.bf16.gmra.mxu0 %v602
        %v827 = vpop.f32.mrf.mxu0
        %v828 = vadd.f32 %v502, %v827
        %v829 = vpop.f32.mrf.mxu0
        %v830 = vadd.f32 %v507, %v829
        %831 = vmatmul.bf16.gmra.mxu0 %v603
        %v832 = vpop.f32.mrf.mxu0
        %v833 = vadd.f32 %v512, %v832
        %v834 = vpop.f32.mrf.mxu0
        %v835 = vadd.f32 %v517, %v834
        %836 = vmatmul.bf16.gmra.mxu0 %v604
        %v837 = vpop.f32.mrf.mxu0
        %v838 = vadd.f32 %v522, %v837
        %v839 = vpop.f32.mrf.mxu0
        %v840 = vadd.f32 %v527, %v839
        %841 = vmatmul.bf16.gmra.mxu0 %v605
        %v842 = vpop.f32.mrf.mxu0
        %v843 = vadd.f32 %v532, %v842
        %v844 = vpop.f32.mrf.mxu0
        %v845 = vadd.f32 %v537, %v844
        %846 = vmatmul.bf16.gmra.mxu0 %v606
        %v847 = vpop.f32.mrf.mxu0
        %v848 = vadd.f32 %v542, %v847
        %v849 = vpop.f32.mrf.mxu0
        %v850 = vadd.f32 %v547, %v849
        %851 = vmatmul.bf16.gmra.mxu0 %v607
        %v852 = vpop.f32.mrf.mxu0
        %v853 = vadd.f32 %v552, %v852
        %v854 = vpop.f32.mrf.mxu0
        %v855 = vadd.f32 %v557, %v854
        %856 = vmatmul.bf16.gmra.mxu0 %v608
        %v857 = vpop.f32.mrf.mxu0
        %v858 = vadd.f32 %v562, %v857
        %v859 = vpop.f32.mrf.mxu0
        %v860 = vadd.f32 %v567, %v859
        %861 = vdwg.mxu0
        %862 = vmatpush.bf16.msra.mxu0 %v454
        %863 = vmatpush.bf16.msra.mxu0 %v446
        %864 = vmatpush.bf16.msra.mxu0 %v438
        %865 = vmatpush.bf16.msra.mxu0 %v430
        %866 = vmatpush.bf16.msra.mxu0 %v422
        %867 = vmatpush.bf16.msra.mxu0 %v414
        %868 = vmatpush.bf16.msra.mxu0 %v406
        %869 = vmatpush.bf16.msra.mxu0 %v398
        %870 = vmatmul.bf16.gmra.mxu0 %v601
        %v871 = vpop.f32.mrf.mxu0
        %v872 = vadd.f32 %v492, %v871
        %v873 = vpop.f32.mrf.mxu0
        %v874 = vadd.f32 %v497, %v873
        %875 = vmatmul.bf16.gmra.mxu0 %v602
        %v876 = vpop.f32.mrf.mxu0
        %v877 = vadd.f32 %v502, %v876
        %v878 = vpop.f32.mrf.mxu0
        %v879 = vadd.f32 %v507, %v878
        %880 = vmatmul.bf16.gmra.mxu0 %v603
        %v881 = vpop.f32.mrf.mxu0
        %v882 = vadd.f32 %v512, %v881
        %v883 = vpop.f32.mrf.mxu0
        %v884 = vadd.f32 %v517, %v883
        %885 = vmatmul.bf16.gmra.mxu0 %v604
        %v886 = vpop.f32.mrf.mxu0
        %v887 = vadd.f32 %v522, %v886
        %v888 = vpop.f32.mrf.mxu0
        %v889 = vadd.f32 %v527, %v888
        %890 = vmatmul.bf16.gmra.mxu0 %v605
        %v891 = vpop.f32.mrf.mxu0
        %v892 = vadd.f32 %v532, %v891
        %v893 = vpop.f32.mrf.mxu0
        %v894 = vadd.f32 %v537, %v893
        %895 = vmatmul.bf16.gmra.mxu0 %v606
        %v896 = vpop.f32.mrf.mxu0
        %v897 = vadd.f32 %v542, %v896
        %v898 = vpop.f32.mrf.mxu0
        %v899 = vadd.f32 %v547, %v898
        %900 = vmatmul.bf16.gmra.mxu0 %v607
        %v901 = vpop.f32.mrf.mxu0
        %v902 = vadd.f32 %v552, %v901
        %v903 = vpop.f32.mrf.mxu0
        %v904 = vadd.f32 %v557, %v903
        %905 = vmatmul.bf16.gmra.mxu0 %v608
        %v906 = vpop.f32.mrf.mxu0
        %v907 = vadd.f32 %v562, %v906
        %v908 = vpop.f32.mrf.mxu0
        %v909 = vadd.f32 %v567, %v908
        %910 = vdwg.mxu0
        %911 = vmatpush.bf16.msra.mxu0 %v455
        %912 = vmatpush.bf16.msra.mxu0 %v447
        %913 = vmatpush.bf16.msra.mxu0 %v439
        %914 = vmatpush.bf16.msra.mxu0 %v431
        %915 = vmatpush.bf16.msra.mxu0 %v423
        %916 = vmatpush.bf16.msra.mxu0 %v415
        %917 = vmatpush.bf16.msra.mxu0 %v407
        %918 = vmatpush.bf16.msra.mxu0 %v399
        %919 = vmatmul.bf16.gmra.mxu0 %v601
        %v920 = vpop.f32.mrf.mxu0
        %v921 = vadd.f32 %v492, %v920
        %v922 = vpop.f32.mrf.mxu0
        %v923 = vadd.f32 %v497, %v922
        %924 = vmatmul.bf16.gmra.mxu0 %v602
        %v925 = vpop.f32.mrf.mxu0
        %v926 = vadd.f32 %v502, %v925
        %v927 = vpop.f32.mrf.mxu0
        %v928 = vadd.f32 %v507, %v927
        %929 = vmatmul.bf16.gmra.mxu0 %v603
        %v930 = vpop.f32.mrf.mxu0
        %v931 = vadd.f32 %v512, %v930
        %v932 = vpop.f32.mrf.mxu0
        %v933 = vadd.f32 %v517, %v932
        %934 = vmatmul.bf16.gmra.mxu0 %v604
        %v935 = vpop.f32.mrf.mxu0
        %v936 = vadd.f32 %v522, %v935
        %v937 = vpop.f32.mrf.mxu0
        %v938 = vadd.f32 %v527, %v937
        %939 = vmatmul.bf16.gmra.mxu0 %v605
        %v940 = vpop.f32.mrf.mxu0
        %v941 = vadd.f32 %v532, %v940
        %v942 = vpop.f32.mrf.mxu0
        %v943 = vadd.f32 %v537, %v942
        %944 = vmatmul.bf16.gmra.mxu0 %v606
        %v945 = vpop.f32.mrf.mxu0
        %v946 = vadd.f32 %v542, %v945
        %v947 = vpop.f32.mrf.mxu0
        %v948 = vadd.f32 %v547, %v947
        %949 = vmatmul.bf16.gmra.mxu0 %v607
        %v950 = vpop.f32.mrf.mxu0
        %v951 = vadd.f32 %v552, %v950
        %v952 = vpop.f32.mrf.mxu0
        %v953 = vadd.f32 %v557, %v952
        %954 = vmatmul.bf16.gmra.mxu0 %v608
        %v955 = vpop.f32.mrf.mxu0
        %v956 = vadd.f32 %v562, %v955
        %v957 = vpop.f32.mrf.mxu0
        %v958 = vadd.f32 %v567, %v957
        %959 = vdwg.mxu0
        %960 = vmatpush.bf16.msra.mxu0 %v456
        %961 = vmatpush.bf16.msra.mxu0 %v448
        %962 = vmatpush.bf16.msra.mxu0 %v440
        %963 = vmatpush.bf16.msra.mxu0 %v432
        %964 = vmatpush.bf16.msra.mxu0 %v424
        %965 = vmatpush.bf16.msra.mxu0 %v416
        %966 = vmatpush.bf16.msra.mxu0 %v408
        %967 = vmatpush.bf16.msra.mxu0 %v400
        %968 = vmatmul.bf16.gmra.mxu0 %v601
        %v969 = vpop.f32.mrf.mxu0
        %v970 = vadd.f32 %v492, %v969
        %v971 = vpop.f32.mrf.mxu0
        %v972 = vadd.f32 %v497, %v971
        %973 = vmatmul.bf16.gmra.mxu0 %v602
        %v974 = vpop.f32.mrf.mxu0
        %v975 = vadd.f32 %v502, %v974
        %v976 = vpop.f32.mrf.mxu0
        %v977 = vadd.f32 %v507, %v976
        %978 = vmatmul.bf16.gmra.mxu0 %v603
        %v979 = vpop.f32.mrf.mxu0
        %v980 = vadd.f32 %v512, %v979
        %v981 = vpop.f32.mrf.mxu0
        %v982 = vadd.f32 %v517, %v981
        %983 = vmatmul.bf16.gmra.mxu0 %v604
        %v984 = vpop.f32.mrf.mxu0
        %v985 = vadd.f32 %v522, %v984
        %v986 = vpop.f32.mrf.mxu0
        %v987 = vadd.f32 %v527, %v986
        %988 = vmatmul.bf16.gmra.mxu0 %v605
        %v989 = vpop.f32.mrf.mxu0
        %v990 = vadd.f32 %v532, %v989
        %v991 = vpop.f32.mrf.mxu0
        %v992 = vadd.f32 %v537, %v991
        %993 = vmatmul.bf16.gmra.mxu0 %v606
        %v994 = vpop.f32.mrf.mxu0
        %v995 = vadd.f32 %v542, %v994
        %v996 = vpop.f32.mrf.mxu0
        %v997 = vadd.f32 %v547, %v996
        %998 = vmatmul.bf16.gmra.mxu0 %v607
        %v999 = vpop.f32.mrf.mxu0
        %v1000 = vadd.f32 %v552, %v999
        %v1001 = vpop.f32.mrf.mxu0
        %v1002 = vadd.f32 %v557, %v1001
        %1003 = vmatmul.bf16.gmra.mxu0 %v608
        %v1004 = vpop.f32.mrf.mxu0
        %v1005 = vadd.f32 %v562, %v1004
        %v1006 = vpop.f32.mrf.mxu0
        %v1007 = vadd.f32 %v567, %v1006
        %1008 = vdwg.mxu0
        %v1009 = vmax.f32 %v627, 0.0
        %v1010 = vmax.f32 %v676, 0.0
        %v1011 = vmax.f32 %v725, 0.0
        %v1012 = vmax.f32 %v774, 0.0
        %v1013 = vmax.f32 %v823, 0.0
        %v1014 = vmax.f32 %v872, 0.0
        %v1015 = vmax.f32 %v921, 0.0
        %v1016 = vmax.f32 %v970, 0.0
        %v1017 = vmax.f32 %v629, 0.0
        %v1018 = vmax.f32 %v678, 0.0
        %v1019 = vmax.f32 %v727, 0.0
        %v1020 = vmax.f32 %v776, 0.0
        %v1021 = vmax.f32 %v825, 0.0
        %v1022 = vmax.f32 %v874, 0.0
        %v1023 = vmax.f32 %v923, 0.0
        %v1024 = vmax.f32 %v972, 0.0
        %v1025 = vmax.f32 %v632, 0.0
        %v1026 = vmax.f32 %v681, 0.0
        %v1027 = vmax.f32 %v730, 0.0
        %v1028 = vmax.f32 %v779, 0.0
        %v1029 = vmax.f32 %v828, 0.0
        %v1030 = vmax.f32 %v877, 0.0
        %v1031 = vmax.f32 %v926, 0.0
        %v1032 = vmax.f32 %v975, 0.0
        %v1033 = vmax.f32 %v634, 0.0
        %v1034 = vmax.f32 %v683, 0.0
        %v1035 = vmax.f32 %v732, 0.0
        %v1036 = vmax.f32 %v781, 0.0
        %v1037 = vmax.f32 %v830, 0.0
        %v1038 = vmax.f32 %v879, 0.0
        %v1039 = vmax.f32 %v928, 0.0
        %v1040 = vmax.f32 %v977, 0.0
        %v1041 = vmax.f32 %v637, 0.0
        %v1042 = vmax.f32 %v686, 0.0
        %v1043 = vmax.f32 %v735, 0.0
        %v1044 = vmax.f32 %v784, 0.0
        %v1045 = vmax.f32 %v833, 0.0
        %v1046 = vmax.f32 %v882, 0.0
        %v1047 = vmax.f32 %v931, 0.0
        %v1048 = vmax.f32 %v980, 0.0
        %v1049 = vmax.f32 %v639, 0.0
        %v1050 = vmax.f32 %v688, 0.0
        %v1051 = vmax.f32 %v737, 0.0
        %v1052 = vmax.f32 %v786, 0.0
        %v1053 = vmax.f32 %v835, 0.0
        %v1054 = vmax.f32 %v884, 0.0
        %v1055 = vmax.f32 %v933, 0.0
        %v1056 = vmax.f32 %v982, 0.0
        %v1057 = vmax.f32 %v642, 0.0
        %v1058 = vmax.f32 %v691, 0.0
        %v1059 = vmax.f32 %v740, 0.0
        %v1060 = vmax.f32 %v789, 0.0
        %v1061 = vmax.f32 %v838, 0.0
        %v1062 = vmax.f32 %v887, 0.0
        %v1063 = vmax.f32 %v936, 0.0
        %v1064 = vmax.f32 %v985, 0.0
        %v1065 = vmax.f32 %v644, 0.0
        %v1066 = vmax.f32 %v693, 0.0
        %v1067 = vmax.f32 %v742, 0.0
        %v1068 = vmax.f32 %v791, 0.0
        %v1069 = vmax.f32 %v840, 0.0
        %v1070 = vmax.f32 %v889, 0.0
        %v1071 = vmax.f32 %v938, 0.0
        %v1072 = vmax.f32 %v987, 0.0
        %v1073 = vmax.f32 %v647, 0.0
        %v1074 = vmax.f32 %v696, 0.0
        %v1075 = vmax.f32 %v745, 0.0
        %v1076 = vmax.f32 %v794, 0.0
        %v1077 = vmax.f32 %v843, 0.0
        %v1078 = vmax.f32 %v892, 0.0
        %v1079 = vmax.f32 %v941, 0.0
        %v1080 = vmax.f32 %v990, 0.0
        %v1081 = vmax.f32 %v649, 0.0
        %v1082 = vmax.f32 %v698, 0.0
        %v1083 = vmax.f32 %v747, 0.0
        %v1084 = vmax.f32 %v796, 0.0
        %v1085 = vmax.f32 %v845, 0.0
        %v1086 = vmax.f32 %v894, 0.0
        %v1087 = vmax.f32 %v943, 0.0
        %v1088 = vmax.f32 %v992, 0.0
        %v1089 = vmax.f32 %v652, 0.0
        %v1090 = vmax.f32 %v701, 0.0
        %v1091 = vmax.f32 %v750, 0.0
        %v1092 = vmax.f32 %v799, 0.0
        %v1093 = vmax.f32 %v848, 0.0
        %v1094 = vmax.f32 %v897, 0.0
        %v1095 = vmax.f32 %v946, 0.0
        %v1096 = vmax.f32 %v995, 0.0
        %v1097 = vmax.f32 %v654, 0.0
        %v1098 = vmax.f32 %v703, 0.0
        %v1099 = vmax.f32 %v752, 0.0
        %v1100 = vmax.f32 %v801, 0.0
        %v1101 = vmax.f32 %v850, 0.0
        %v1102 = vmax.f32 %v899, 0.0
        %v1103 = vmax.f32 %v948, 0.0
        %v1104 = vmax.f32 %v997, 0.0
        %v1105 = vmax.f32 %v657, 0.0
        %v1106 = vmax.f32 %v706, 0.0
        %v1107 = vmax.f32 %v755, 0.0
        %v1108 = vmax.f32 %v804, 0.0
        %v1109 = vmax.f32 %v853, 0.0
        %v1110 = vmax.f32 %v902, 0.0
        %v1111 = vmax.f32 %v951, 0.0
        %v1112 = vmax.f32 %v1000, 0.0
        %v1113 = vmax.f32 %v659, 0.0
        %v1114 = vmax.f32 %v708, 0.0
        %v1115 = vmax.f32 %v757, 0.0
        %v1116 = vmax.f32 %v806, 0.0
        %v1117 = vmax.f32 %v855, 0.0
        %v1118 = vmax.f32 %v904, 0.0
        %v1119 = vmax.f32 %v953, 0.0
        %v1120 = vmax.f32 %v1002, 0.0
        %v1121 = vmax.f32 %v662, 0.0
        %v1122 = vmax.f32 %v711, 0.0
        %v1123 = vmax.f32 %v760, 0.0
        %v1124 = vmax.f32 %v809, 0.0
        %v1125 = vmax.f32 %v858, 0.0
        %v1126 = vmax.f32 %v907, 0.0
        %v1127 = vmax.f32 %v956, 0.0
        %v1128 = vmax.f32 %v1005, 0.0
        %v1129 = vmax.f32 %v664, 0.0
        %v1130 = vmax.f32 %v713, 0.0
        %v1131 = vmax.f32 %v762, 0.0
        %v1132 = vmax.f32 %v811, 0.0
        %v1133 = vmax.f32 %v860, 0.0
        %v1134 = vmax.f32 %v909, 0.0
        %v1135 = vmax.f32 %v958, 0.0
        %v1136 = vmax.f32 %v1007, 0.0
        %v1137 = vld [vmem:[%s3] sm:$0xf]
        %v1138 = vld [vmem:[%s3 + $0x4] sm:$0xf]
        %v1139 = vld [vmem:[%s3 + $0x8] sm:$0xf]
        %v1140 = vld [vmem:[%s3 + $0xc] sm:$0xf]
        %v1141 = vld [vmem:[%s3 + $0x10] sm:$0xf]
        %v1142 = vld [vmem:[%s3 + $0x14] sm:$0xf]
        %v1143 = vld [vmem:[%s3 + $0x18] sm:$0xf]
        %v1144 = vld [vmem:[%s3 + $0x1c] sm:$0xf]
        %v1145 = vld [vmem:[%s3 + $0x20] sm:$0xf]
        %v1146 = vld [vmem:[%s3 + $0x24] sm:$0xf]
        %v1147 = vld [vmem:[%s3 + $0x28] sm:$0xf]
        %v1148 = vld [vmem:[%s3 + $0x2c] sm:$0xf]
        %v1149 = vld [vmem:[%s3 + $0x30] sm:$0xf]
        %v1150 = vld [vmem:[%s3 + $0x34] sm:$0xf]
        %v1151 = vld [vmem:[%s3 + $0x38] sm:$0xf]
        %v1152 = vld [vmem:[%s3 + $0x3c] sm:$0xf]
        %v1153 = vpack.c.bf16 %v1017, %v1009
        %v1154 = vpack.c.bf16 %v1018, %v1010
        %v1155 = vpack.c.bf16 %v1019, %v1011
        %v1156 = vpack.c.bf16 %v1020, %v1012
        %v1157 = vpack.c.bf16 %v1021, %v1013
        %v1158 = vpack.c.bf16 %v1022, %v1014
        %v1159 = vpack.c.bf16 %v1023, %v1015
        %v1160 = vpack.c.bf16 %v1024, %v1016
        %v1161 = vpack.c.bf16 %v1033, %v1025
        %v1162 = vpack.c.bf16 %v1034, %v1026
        %v1163 = vpack.c.bf16 %v1035, %v1027
        %v1164 = vpack.c.bf16 %v1036, %v1028
        %v1165 = vpack.c.bf16 %v1037, %v1029
        %v1166 = vpack.c.bf16 %v1038, %v1030
        %v1167 = vpack.c.bf16 %v1039, %v1031
        %v1168 = vpack.c.bf16 %v1040, %v1032
        %v1169 = vpack.c.bf16 %v1049, %v1041
        %v1170 = vpack.c.bf16 %v1050, %v1042
        %v1171 = vpack.c.bf16 %v1051, %v1043
        %v1172 = vpack.c.bf16 %v1052, %v1044
        %v1173 = vpack.c.bf16 %v1053, %v1045
        %v1174 = vpack.c.bf16 %v1054, %v1046
        %v1175 = vpack.c.bf16 %v1055, %v1047
        %v1176 = vpack.c.bf16 %v1056, %v1048
        %v1177 = vpack.c.bf16 %v1065, %v1057
        %v1178 = vpack.c.bf16 %v1066, %v1058
        %v1179 = vpack.c.bf16 %v1067, %v1059
        %v1180 = vpack.c.bf16 %v1068, %v1060
        %v1181 = vpack.c.bf16 %v1069, %v1061
        %v1182 = vpack.c.bf16 %v1070, %v1062
        %v1183 = vpack.c.bf16 %v1071, %v1063
        %v1184 = vpack.c.bf16 %v1072, %v1064
        %v1185 = vpack.c.bf16 %v1081, %v1073
        %v1186 = vpack.c.bf16 %v1082, %v1074
        %v1187 = vpack.c.bf16 %v1083, %v1075
        %v1188 = vpack.c.bf16 %v1084, %v1076
        %v1189 = vpack.c.bf16 %v1085, %v1077
        %v1190 = vpack.c.bf16 %v1086, %v1078
        %v1191 = vpack.c.bf16 %v1087, %v1079
        %v1192 = vpack.c.bf16 %v1088, %v1080
        %v1193 = vpack.c.bf16 %v1097, %v1089
        %v1194 = vpack.c.bf16 %v1098, %v1090
        %v1195 = vpack.c.bf16 %v1099, %v1091
        %v1196 = vpack.c.bf16 %v1100, %v1092
        %v1197 = vpack.c.bf16 %v1101, %v1093
        %v1198 = vpack.c.bf16 %v1102, %v1094
        %v1199 = vpack.c.bf16 %v1103, %v1095
        %v1200 = vpack.c.bf16 %v1104, %v1096
        %v1201 = vpack.c.bf16 %v1113, %v1105
        %v1202 = vpack.c.bf16 %v1114, %v1106
        %v1203 = vpack.c.bf16 %v1115, %v1107
        %v1204 = vpack.c.bf16 %v1116, %v1108
        %v1205 = vpack.c.bf16 %v1117, %v1109
        %v1206 = vpack.c.bf16 %v1118, %v1110
        %v1207 = vpack.c.bf16 %v1119, %v1111
        %v1208 = vpack.c.bf16 %v1120, %v1112
        %v1209 = vpack.c.bf16 %v1129, %v1121
        %v1210 = vpack.c.bf16 %v1130, %v1122
        %v1211 = vpack.c.bf16 %v1131, %v1123
        %v1212 = vpack.c.bf16 %v1132, %v1124
        %v1213 = vpack.c.bf16 %v1133, %v1125
        %v1214 = vpack.c.bf16 %v1134, %v1126
        %v1215 = vpack.c.bf16 %v1135, %v1127
        %v1216 = vpack.c.bf16 %v1136, %v1128
        %v1217 = vld [vmem:[%s4] sm:$0xff]
        %v1218 = vld [vmem:[%s4 + $0x8] sm:$0xff]
        %v1219 = vld [vmem:[%s4 + $0x10] sm:$0xff]
        %v1220 = vld [vmem:[%s4 + $0x18] sm:$0xff]
        %v1221 = vld [vmem:[%s4 + $0x20] sm:$0xff]
        %v1222 = vld [vmem:[%s4 + $0x28] sm:$0xff]
        %v1223 = vld [vmem:[%s4 + $0x30] sm:$0xff]
        %v1224 = vld [vmem:[%s4 + $0x38] sm:$0xff]
        %v1225 = vld [vmem:[%s4 + $0x40] sm:$0xff]
        %v1226 = vld [vmem:[%s4 + $0x48] sm:$0xff]
        %v1227 = vld [vmem:[%s4 + $0x50] sm:$0xff]
        %v1228 = vld [vmem:[%s4 + $0x58] sm:$0xff]
        %v1229 = vld [vmem:[%s4 + $0x60] sm:$0xff]
        %v1230 = vld [vmem:[%s4 + $0x68] sm:$0xff]
        %v1231 = vld [vmem:[%s4 + $0x70] sm:$0xff]
        %v1232 = vld [vmem:[%s4 + $0x78] sm:$0xff]
        %1234 = vset.pattern.permute.xlu0 0
        %1235 = vperm.xlu0 %1234, %v1217
        %v1236 = vpop.permute.xlu0 %1235
        %1239 = vset.pattern.permute.xlu0 0
        %1240 = vperm.xlu0 %1239, %v1218
        %v1241 = vpop.permute.xlu0 %1240
        %1244 = vset.pattern.permute.xlu0 0
        %1245 = vperm.xlu0 %1244, %v1219
        %v1246 = vpop.permute.xlu0 %1245
        %1249 = vset.pattern.permute.xlu0 0
        %1250 = vperm.xlu0 %1249, %v1220
        %v1251 = vpop.permute.xlu0 %1250
        %1254 = vset.pattern.permute.xlu0 0
        %1255 = vperm.xlu0 %1254, %v1221
        %v1256 = vpop.permute.xlu0 %1255
        %1259 = vset.pattern.permute.xlu0 0
        %1260 = vperm.xlu0 %1259, %v1222
        %v1261 = vpop.permute.xlu0 %1260
        %1264 = vset.pattern.permute.xlu0 0
        %1265 = vperm.xlu0 %1264, %v1223
        %v1266 = vpop.permute.xlu0 %1265
        %1269 = vset.pattern.permute.xlu0 0
        %1270 = vperm.xlu0 %1269, %v1224
        %v1271 = vpop.permute.xlu0 %1270
        %1274 = vset.pattern.permute.xlu0 0
        %1275 = vperm.xlu0 %1274, %v1225
        %v1276 = vpop.permute.xlu0 %1275
        %1279 = vset.pattern.permute.xlu0 0
        %1280 = vperm.xlu0 %1279, %v1226
        %v1281 = vpop.permute.xlu0 %1280
        %1284 = vset.pattern.permute.xlu0 0
        %1285 = vperm.xlu0 %1284, %v1227
        %v1286 = vpop.permute.xlu0 %1285
        %1289 = vset.pattern.permute.xlu0 0
        %1290 = vperm.xlu0 %1289, %v1228
        %v1291 = vpop.permute.xlu0 %1290
        %1294 = vset.pattern.permute.xlu0 0
        %1295 = vperm.xlu0 %1294, %v1229
        %v1296 = vpop.permute.xlu0 %1295
        %1299 = vset.pattern.permute.xlu0 0
        %1300 = vperm.xlu0 %1299, %v1230
        %v1301 = vpop.permute.xlu0 %1300
        %1304 = vset.pattern.permute.xlu0 0
        %1305 = vperm.xlu0 %1304, %v1231
        %v1306 = vpop.permute.xlu0 %1305
        %1309 = vset.pattern.permute.xlu0 0
        %1310 = vperm.xlu0 %1309, %v1232
        %v1311 = vpop.permute.xlu0 %1310
        %v1329 = vunpack.c.l.b16 %v1137
        %v1330 = vunpack.c.l.b16 %v1138
        %v1331 = vunpack.c.l.b16 %v1139
        %v1332 = vunpack.c.l.b16 %v1140
        %v1333 = vunpack.c.l.b16 %v1141
        %v1334 = vunpack.c.l.b16 %v1142
        %v1335 = vunpack.c.l.b16 %v1143
        %v1336 = vunpack.c.l.b16 %v1144
        %v1337 = vunpack.c.l.b16 %v1145
        %v1338 = vunpack.c.l.b16 %v1146
        %v1339 = vunpack.c.l.b16 %v1147
        %v1340 = vunpack.c.l.b16 %v1148
        %v1341 = vunpack.c.l.b16 %v1149
        %v1342 = vunpack.c.l.b16 %v1150
        %v1343 = vunpack.c.l.b16 %v1151
        %v1344 = vunpack.c.l.b16 %v1152
        %v1345 = vpack.c.b16 %v1330, %v1329
        %v1346 = vpack.c.b16 %v1332, %v1331
        %v1347 = vpack.c.b16 %v1334, %v1333
        %v1348 = vpack.c.b16 %v1336, %v1335
        %v1349 = vpack.c.b16 %v1338, %v1337
        %v1350 = vpack.c.b16 %v1340, %v1339
        %v1351 = vpack.c.b16 %v1342, %v1341
        %v1352 = vpack.c.b16 %v1344, %v1343
        %1361 = vmatpush.bf16.msra.mxu0 %v1209
        %1362 = vmatpush.bf16.msra.mxu0 %v1201
        %1363 = vmatpush.bf16.msra.mxu0 %v1193
        %1364 = vmatpush.bf16.msra.mxu0 %v1185
        %1365 = vmatpush.bf16.msra.mxu0 %v1177
        %1366 = vmatpush.bf16.msra.mxu0 %v1169
        %1367 = vmatpush.bf16.msra.mxu0 %v1161
        %1368 = vmatpush.bf16.msra.mxu0 %v1153
        %1369 = vmatmul.bf16.gmra.mxu0 %v1345
        %v1370 = vpop.f32.mrf.mxu0
        %v1371 = vadd.f32 %v1236, %v1370
        %v1372 = vpop.f32.mrf.mxu0
        %v1373 = vadd.f32 %v1241, %v1372
        %1374 = vmatmul.bf16.gmra.mxu0 %v1346
        %v1375 = vpop.f32.mrf.mxu0
        %v1376 = vadd.f32 %v1246, %v1375
        %v1377 = vpop.f32.mrf.mxu0
        %v1378 = vadd.f32 %v1251, %v1377
        %1379 = vmatmul.bf16.gmra.mxu0 %v1347
        %v1380 = vpop.f32.mrf.mxu0
        %v1381 = vadd.f32 %v1256, %v1380
        %v1382 = vpop.f32.mrf.mxu0
        %v1383 = vadd.f32 %v1261, %v1382
        %1384 = vmatmul.bf16.gmra.mxu0 %v1348
        %v1385 = vpop.f32.mrf.mxu0
        %v1386 = vadd.f32 %v1266, %v1385
        %v1387 = vpop.f32.mrf.mxu0
        %v1388 = vadd.f32 %v1271, %v1387
        %1389 = vmatmul.bf16.gmra.mxu0 %v1349
        %v1390 = vpop.f32.mrf.mxu0
        %v1391 = vadd.f32 %v1276, %v1390
        %v1392 = vpop.f32.mrf.mxu0
        %v1393 = vadd.f32 %v1281, %v1392
        %1394 = vmatmul.bf16.gmra.mxu0 %v1350
        %v1395 = vpop.f32.mrf.mxu0
        %v1396 = vadd.f32 %v1286, %v1395
        %v1397 = vpop.f32.mrf.mxu0
        %v1398 = vadd.f32 %v1291, %v1397
        %1399 = vmatmul.bf16.gmra.mxu0 %v1351
        %v1400 = vpop.f32.mrf.mxu0
        %v1401 = vadd.f32 %v1296, %v1400
        %v1402 = vpop.f32.mrf.mxu0
        %v1403 = vadd.f32 %v1301, %v1402
        %1404 = vmatmul.bf16.gmra.mxu0 %v1352
        %v1405 = vpop.f32.mrf.mxu0
        %v1406 = vadd.f32 %v1306, %v1405
        %v1407 = vpop.f32.mrf.mxu0
        %v1408 = vadd.f32 %v1311, %v1407
        %1409 = vdwg.mxu0
        %1410 = vmatpush.bf16.msra.mxu0 %v1210
        %1411 = vmatpush.bf16.msra.mxu0 %v1202
        %1412 = vmatpush.bf16.msra.mxu0 %v1194
        %1413 = vmatpush.bf16.msra.mxu0 %v1186
        %1414 = vmatpush.bf16.msra.mxu0 %v1178
        %1415 = vmatpush.bf16.msra.mxu0 %v1170
        %1416 = vmatpush.bf16.msra.mxu0 %v1162
        %1417 = vmatpush.bf16.msra.mxu0 %v1154
        %1418 = vmatmul.bf16.gmra.mxu0 %v1345
        %v1419 = vpop.f32.mrf.mxu0
        %v1420 = vadd.f32 %v1236, %v1419
        %v1421 = vpop.f32.mrf.mxu0
        %v1422 = vadd.f32 %v1241, %v1421
        %1423 = vmatmul.bf16.gmra.mxu0 %v1346
        %v1424 = vpop.f32.mrf.mxu0
        %v1425 = vadd.f32 %v1246, %v1424
        %v1426 = vpop.f32.mrf.mxu0
        %v1427 = vadd.f32 %v1251, %v1426
        %1428 = vmatmul.bf16.gmra.mxu0 %v1347
        %v1429 = vpop.f32.mrf.mxu0
        %v1430 = vadd.f32 %v1256, %v1429
        %v1431 = vpop.f32.mrf.mxu0
        %v1432 = vadd.f32 %v1261, %v1431
        %1433 = vmatmul.bf16.gmra.mxu0 %v1348
        %v1434 = vpop.f32.mrf.mxu0
        %v1435 = vadd.f32 %v1266, %v1434
        %v1436 = vpop.f32.mrf.mxu0
        %v1437 = vadd.f32 %v1271, %v1436
        %1438 = vmatmul.bf16.gmra.mxu0 %v1349
        %v1439 = vpop.f32.mrf.mxu0
        %v1440 = vadd.f32 %v1276, %v1439
        %v1441 = vpop.f32.mrf.mxu0
        %v1442 = vadd.f32 %v1281, %v1441
        %1443 = vmatmul.bf16.gmra.mxu0 %v1350
        %v1444 = vpop.f32.mrf.mxu0
        %v1445 = vadd.f32 %v1286, %v1444
        %v1446 = vpop.f32.mrf.mxu0
        %v1447 = vadd.f32 %v1291, %v1446
        %1448 = vmatmul.bf16.gmra.mxu0 %v1351
        %v1449 = vpop.f32.mrf.mxu0
        %v1450 = vadd.f32 %v1296, %v1449
        %v1451 = vpop.f32.mrf.mxu0
        %v1452 = vadd.f32 %v1301, %v1451
        %1453 = vmatmul.bf16.gmra.mxu0 %v1352
        %v1454 = vpop.f32.mrf.mxu0
        %v1455 = vadd.f32 %v1306, %v1454
        %v1456 = vpop.f32.mrf.mxu0
        %v1457 = vadd.f32 %v1311, %v1456
        %1458 = vdwg.mxu0
        %1459 = vmatpush.bf16.msra.mxu0 %v1211
        %1460 = vmatpush.bf16.msra.mxu0 %v1203
        %1461 = vmatpush.bf16.msra.mxu0 %v1195
        %1462 = vmatpush.bf16.msra.mxu0 %v1187
        %1463 = vmatpush.bf16.msra.mxu0 %v1179
        %1464 = vmatpush.bf16.msra.mxu0 %v1171
        %1465 = vmatpush.bf16.msra.mxu0 %v1163
        %1466 = vmatpush.bf16.msra.mxu0 %v1155
        %1467 = vmatmul.bf16.gmra.mxu0 %v1345
        %v1468 = vpop.f32.mrf.mxu0
        %v1469 = vadd.f32 %v1236, %v1468
        %v1470 = vpop.f32.mrf.mxu0
        %v1471 = vadd.f32 %v1241, %v1470
        %1472 = vmatmul.bf16.gmra.mxu0 %v1346
        %v1473 = vpop.f32.mrf.mxu0
        %v1474 = vadd.f32 %v1246, %v1473
        %v1475 = vpop.f32.mrf.mxu0
        %v1476 = vadd.f32 %v1251, %v1475
        %1477 = vmatmul.bf16.gmra.mxu0 %v1347
        %v1478 = vpop.f32.mrf.mxu0
        %v1479 = vadd.f32 %v1256, %v1478
        %v1480 = vpop.f32.mrf.mxu0
        %v1481 = vadd.f32 %v1261, %v1480
        %1482 = vmatmul.bf16.gmra.mxu0 %v1348
        %v1483 = vpop.f32.mrf.mxu0
        %v1484 = vadd.f32 %v1266, %v1483
        %v1485 = vpop.f32.mrf.mxu0
        %v1486 = vadd.f32 %v1271, %v1485
        %1487 = vmatmul.bf16.gmra.mxu0 %v1349
        %v1488 = vpop.f32.mrf.mxu0
        %v1489 = vadd.f32 %v1276, %v1488
        %v1490 = vpop.f32.mrf.mxu0
        %v1491 = vadd.f32 %v1281, %v1490
        %1492 = vmatmul.bf16.gmra.mxu0 %v1350
        %v1493 = vpop.f32.mrf.mxu0
        %v1494 = vadd.f32 %v1286, %v1493
        %v1495 = vpop.f32.mrf.mxu0
        %v1496 = vadd.f32 %v1291, %v1495
        %1497 = vmatmul.bf16.gmra.mxu0 %v1351
        %v1498 = vpop.f32.mrf.mxu0
        %v1499 = vadd.f32 %v1296, %v1498
        %v1500 = vpop.f32.mrf.mxu0
        %v1501 = vadd.f32 %v1301, %v1500
        %1502 = vmatmul.bf16.gmra.mxu0 %v1352
        %v1503 = vpop.f32.mrf.mxu0
        %v1504 = vadd.f32 %v1306, %v1503
        %v1505 = vpop.f32.mrf.mxu0
        %v1506 = vadd.f32 %v1311, %v1505
        %1507 = vdwg.mxu0
        %1508 = vmatpush.bf16.msra.mxu0 %v1212
        %1509 = vmatpush.bf16.msra.mxu0 %v1204
        %1510 = vmatpush.bf16.msra.mxu0 %v1196
        %1511 = vmatpush.bf16.msra.mxu0 %v1188
        %1512 = vmatpush.bf16.msra.mxu0 %v1180
        %1513 = vmatpush.bf16.msra.mxu0 %v1172
        %1514 = vmatpush.bf16.msra.mxu0 %v1164
        %1515 = vmatpush.bf16.msra.mxu0 %v1156
        %1516 = vmatmul.bf16.gmra.mxu0 %v1345
        %v1517 = vpop.f32.mrf.mxu0
        %v1518 = vadd.f32 %v1236, %v1517
        %v1519 = vpop.f32.mrf.mxu0
        %v1520 = vadd.f32 %v1241, %v1519
        %1521 = vmatmul.bf16.gmra.mxu0 %v1346
        %v1522 = vpop.f32.mrf.mxu0
        %v1523 = vadd.f32 %v1246, %v1522
        %v1524 = vpop.f32.mrf.mxu0
        %v1525 = vadd.f32 %v1251, %v1524
        %1526 = vmatmul.bf16.gmra.mxu0 %v1347
        %v1527 = vpop.f32.mrf.mxu0
        %v1528 = vadd.f32 %v1256, %v1527
        %v1529 = vpop.f32.mrf.mxu0
        %v1530 = vadd.f32 %v1261, %v1529
        %1531 = vmatmul.bf16.gmra.mxu0 %v1348
        %v1532 = vpop.f32.mrf.mxu0
        %v1533 = vadd.f32 %v1266, %v1532
        %v1534 = vpop.f32.mrf.mxu0
        %v1535 = vadd.f32 %v1271, %v1534
        %1536 = vmatmul.bf16.gmra.mxu0 %v1349
        %v1537 = vpop.f32.mrf.mxu0
        %v1538 = vadd.f32 %v1276, %v1537
        %v1539 = vpop.f32.mrf.mxu0
        %v1540 = vadd.f32 %v1281, %v1539
        %1541 = vmatmul.bf16.gmra.mxu0 %v1350
        %v1542 = vpop.f32.mrf.mxu0
        %v1543 = vadd.f32 %v1286, %v1542
        %v1544 = vpop.f32.mrf.mxu0
        %v1545 = vadd.f32 %v1291, %v1544
        %1546 = vmatmul.bf16.gmra.mxu0 %v1351
        %v1547 = vpop.f32.mrf.mxu0
        %v1548 = vadd.f32 %v1296, %v1547
        %v1549 = vpop.f32.mrf.mxu0
        %v1550 = vadd.f32 %v1301, %v1549
        %1551 = vmatmul.bf16.gmra.mxu0 %v1352
        %v1552 = vpop.f32.mrf.mxu0
        %v1553 = vadd.f32 %v1306, %v1552
        %v1554 = vpop.f32.mrf.mxu0
        %v1555 = vadd.f32 %v1311, %v1554
        %1556 = vdwg.mxu0
        %1557 = vmatpush.bf16.msra.mxu0 %v1213
        %1558 = vmatpush.bf16.msra.mxu0 %v1205
        %1559 = vmatpush.bf16.msra.mxu0 %v1197
        %1560 = vmatpush.bf16.msra.mxu0 %v1189
        %1561 = vmatpush.bf16.msra.mxu0 %v1181
        %1562 = vmatpush.bf16.msra.mxu0 %v1173
        %1563 = vmatpush.bf16.msra.mxu0 %v1165
        %1564 = vmatpush.bf16.msra.mxu0 %v1157
        %1565 = vmatmul.bf16.gmra.mxu0 %v1345
        %v1566 = vpop.f32.mrf.mxu0
        %v1567 = vadd.f32 %v1236, %v1566
        %v1568 = vpop.f32.mrf.mxu0
        %v1569 = vadd.f32 %v1241, %v1568
        %1570 = vmatmul.bf16.gmra.mxu0 %v1346
        %v1571 = vpop.f32.mrf.mxu0
        %v1572 = vadd.f32 %v1246, %v1571
        %v1573 = vpop.f32.mrf.mxu0
        %v1574 = vadd.f32 %v1251, %v1573
        %1575 = vmatmul.bf16.gmra.mxu0 %v1347
        %v1576 = vpop.f32.mrf.mxu0
        %v1577 = vadd.f32 %v1256, %v1576
        %v1578 = vpop.f32.mrf.mxu0
        %v1579 = vadd.f32 %v1261, %v1578
        %1580 = vmatmul.bf16.gmra.mxu0 %v1348
        %v1581 = vpop.f32.mrf.mxu0
        %v1582 = vadd.f32 %v1266, %v1581
        %v1583 = vpop.f32.mrf.mxu0
        %v1584 = vadd.f32 %v1271, %v1583
        %1585 = vmatmul.bf16.gmra.mxu0 %v1349
        %v1586 = vpop.f32.mrf.mxu0
        %v1587 = vadd.f32 %v1276, %v1586
        %v1588 = vpop.f32.mrf.mxu0
        %v1589 = vadd.f32 %v1281, %v1588
        %1590 = vmatmul.bf16.gmra.mxu0 %v1350
        %v1591 = vpop.f32.mrf.mxu0
        %v1592 = vadd.f32 %v1286, %v1591
        %v1593 = vpop.f32.mrf.mxu0
        %v1594 = vadd.f32 %v1291, %v1593
        %1595 = vmatmul.bf16.gmra.mxu0 %v1351
        %v1596 = vpop.f32.mrf.mxu0
        %v1597 = vadd.f32 %v1296, %v1596
        %v1598 = vpop.f32.mrf.mxu0
        %v1599 = vadd.f32 %v1301, %v1598
        %1600 = vmatmul.bf16.gmra.mxu0 %v1352
        %v1601 = vpop.f32.mrf.mxu0
        %v1602 = vadd.f32 %v1306, %v1601
        %v1603 = vpop.f32.mrf.mxu0
        %v1604 = vadd.f32 %v1311, %v1603
        %1605 = vdwg.mxu0
        %1606 = vmatpush.bf16.msra.mxu0 %v1214
        %1607 = vmatpush.bf16.msra.mxu0 %v1206
        %1608 = vmatpush.bf16.msra.mxu0 %v1198
        %1609 = vmatpush.bf16.msra.mxu0 %v1190
        %1610 = vmatpush.bf16.msra.mxu0 %v1182
        %1611 = vmatpush.bf16.msra.mxu0 %v1174
        %1612 = vmatpush.bf16.msra.mxu0 %v1166
        %1613 = vmatpush.bf16.msra.mxu0 %v1158
        %1614 = vmatmul.bf16.gmra.mxu0 %v1345
        %v1615 = vpop.f32.mrf.mxu0
        %v1616 = vadd.f32 %v1236, %v1615
        %v1617 = vpop.f32.mrf.mxu0
        %v1618 = vadd.f32 %v1241, %v1617
        %1619 = vmatmul.bf16.gmra.mxu0 %v1346
        %v1620 = vpop.f32.mrf.mxu0
        %v1621 = vadd.f32 %v1246, %v1620
        %v1622 = vpop.f32.mrf.mxu0
        %v1623 = vadd.f32 %v1251, %v1622
        %1624 = vmatmul.bf16.gmra.mxu0 %v1347
        %v1625 = vpop.f32.mrf.mxu0
        %v1626 = vadd.f32 %v1256, %v1625
        %v1627 = vpop.f32.mrf.mxu0
        %v1628 = vadd.f32 %v1261, %v1627
        %1629 = vmatmul.bf16.gmra.mxu0 %v1348
        %v1630 = vpop.f32.mrf.mxu0
        %v1631 = vadd.f32 %v1266, %v1630
        %v1632 = vpop.f32.mrf.mxu0
        %v1633 = vadd.f32 %v1271, %v1632
        %1634 = vmatmul.bf16.gmra.mxu0 %v1349
        %v1635 = vpop.f32.mrf.mxu0
        %v1636 = vadd.f32 %v1276, %v1635
        %v1637 = vpop.f32.mrf.mxu0
        %v1638 = vadd.f32 %v1281, %v1637
        %1639 = vmatmul.bf16.gmra.mxu0 %v1350
        %v1640 = vpop.f32.mrf.mxu0
        %v1641 = vadd.f32 %v1286, %v1640
        %v1642 = vpop.f32.mrf.mxu0
        %v1643 = vadd.f32 %v1291, %v1642
        %1644 = vmatmul.bf16.gmra.mxu0 %v1351
        %v1645 = vpop.f32.mrf.mxu0
        %v1646 = vadd.f32 %v1296, %v1645
        %v1647 = vpop.f32.mrf.mxu0
        %v1648 = vadd.f32 %v1301, %v1647
        %1649 = vmatmul.bf16.gmra.mxu0 %v1352
        %v1650 = vpop.f32.mrf.mxu0
        %v1651 = vadd.f32 %v1306, %v1650
        %v1652 = vpop.f32.mrf.mxu0
        %v1653 = vadd.f32 %v1311, %v1652
        %1654 = vdwg.mxu0
        %1655 = vmatpush.bf16.msra.mxu0 %v1215
        %1656 = vmatpush.bf16.msra.mxu0 %v1207
        %1657 = vmatpush.bf16.msra.mxu0 %v1199
        %1658 = vmatpush.bf16.msra.mxu0 %v1191
        %1659 = vmatpush.bf16.msra.mxu0 %v1183
        %1660 = vmatpush.bf16.msra.mxu0 %v1175
        %1661 = vmatpush.bf16.msra.mxu0 %v1167
        %1662 = vmatpush.bf16.msra.mxu0 %v1159
        %1663 = vmatmul.bf16.gmra.mxu0 %v1345
        %v1664 = vpop.f32.mrf.mxu0
        %v1665 = vadd.f32 %v1236, %v1664
        %v1666 = vpop.f32.mrf.mxu0
        %v1667 = vadd.f32 %v1241, %v1666
        %1668 = vmatmul.bf16.gmra.mxu0 %v1346
        %v1669 = vpop.f32.mrf.mxu0
        %v1670 = vadd.f32 %v1246, %v1669
        %v1671 = vpop.f32.mrf.mxu0
        %v1672 = vadd.f32 %v1251, %v1671
        %1673 = vmatmul.bf16.gmra.mxu0 %v1347
        %v1674 = vpop.f32.mrf.mxu0
        %v1675 = vadd.f32 %v1256, %v1674
        %v1676 = vpop.f32.mrf.mxu0
        %v1677 = vadd.f32 %v1261, %v1676
        %1678 = vmatmul.bf16.gmra.mxu0 %v1348
        %v1679 = vpop.f32.mrf.mxu0
        %v1680 = vadd.f32 %v1266, %v1679
        %v1681 = vpop.f32.mrf.mxu0
        %v1682 = vadd.f32 %v1271, %v1681
        %1683 = vmatmul.bf16.gmra.mxu0 %v1349
        %v1684 = vpop.f32.mrf.mxu0
        %v1685 = vadd.f32 %v1276, %v1684
        %v1686 = vpop.f32.mrf.mxu0
        %v1687 = vadd.f32 %v1281, %v1686
        %1688 = vmatmul.bf16.gmra.mxu0 %v1350
        %v1689 = vpop.f32.mrf.mxu0
        %v1690 = vadd.f32 %v1286, %v1689
        %v1691 = vpop.f32.mrf.mxu0
        %v1692 = vadd.f32 %v1291, %v1691
        %1693 = vmatmul.bf16.gmra.mxu0 %v1351
        %v1694 = vpop.f32.mrf.mxu0
        %v1695 = vadd.f32 %v1296, %v1694
        %v1696 = vpop.f32.mrf.mxu0
        %v1697 = vadd.f32 %v1301, %v1696
        %1698 = vmatmul.bf16.gmra.mxu0 %v1352
        %v1699 = vpop.f32.mrf.mxu0
        %v1700 = vadd.f32 %v1306, %v1699
        %v1701 = vpop.f32.mrf.mxu0
        %v1702 = vadd.f32 %v1311, %v1701
        %1703 = vdwg.mxu0
        %1704 = vmatpush.bf16.msra.mxu0 %v1216
        %1705 = vmatpush.bf16.msra.mxu0 %v1208
        %1706 = vmatpush.bf16.msra.mxu0 %v1200
        %1707 = vmatpush.bf16.msra.mxu0 %v1192
        %1708 = vmatpush.bf16.msra.mxu0 %v1184
        %1709 = vmatpush.bf16.msra.mxu0 %v1176
        %1710 = vmatpush.bf16.msra.mxu0 %v1168
        %1711 = vmatpush.bf16.msra.mxu0 %v1160
        %1712 = vmatmul.bf16.gmra.mxu0 %v1345
        %v1713 = vpop.f32.mrf.mxu0
        %v1714 = vadd.f32 %v1236, %v1713
        %v1715 = vpop.f32.mrf.mxu0
        %v1716 = vadd.f32 %v1241, %v1715
        %1717 = vmatmul.bf16.gmra.mxu0 %v1346
        %v1718 = vpop.f32.mrf.mxu0
        %v1719 = vadd.f32 %v1246, %v1718
        %v1720 = vpop.f32.mrf.mxu0
        %v1721 = vadd.f32 %v1251, %v1720
        %1722 = vmatmul.bf16.gmra.mxu0 %v1347
        %v1723 = vpop.f32.mrf.mxu0
        %v1724 = vadd.f32 %v1256, %v1723
        %v1725 = vpop.f32.mrf.mxu0
        %v1726 = vadd.f32 %v1261, %v1725
        %1727 = vmatmul.bf16.gmra.mxu0 %v1348
        %v1728 = vpop.f32.mrf.mxu0
        %v1729 = vadd.f32 %v1266, %v1728
        %v1730 = vpop.f32.mrf.mxu0
        %v1731 = vadd.f32 %v1271, %v1730
        %1732 = vmatmul.bf16.gmra.mxu0 %v1349
        %v1733 = vpop.f32.mrf.mxu0
        %v1734 = vadd.f32 %v1276, %v1733
        %v1735 = vpop.f32.mrf.mxu0
        %v1736 = vadd.f32 %v1281, %v1735
        %1737 = vmatmul.bf16.gmra.mxu0 %v1350
        %v1738 = vpop.f32.mrf.mxu0
        %v1739 = vadd.f32 %v1286, %v1738
        %v1740 = vpop.f32.mrf.mxu0
        %v1741 = vadd.f32 %v1291, %v1740
        %1742 = vmatmul.bf16.gmra.mxu0 %v1351
        %v1743 = vpop.f32.mrf.mxu0
        %v1744 = vadd.f32 %v1296, %v1743
        %v1745 = vpop.f32.mrf.mxu0
        %v1746 = vadd.f32 %v1301, %v1745
        %1747 = vmatmul.bf16.gmra.mxu0 %v1352
        %v1748 = vpop.f32.mrf.mxu0
        %v1749 = vadd.f32 %v1306, %v1748
        %v1750 = vpop.f32.mrf.mxu0
        %v1751 = vadd.f32 %v1311, %v1750
        %1752 = vdwg.mxu0
        %v1753 = vmax.f32 %v1371, 0.0
        %v1754 = vmax.f32 %v1420, 0.0
        %v1755 = vmax.f32 %v1469, 0.0
        %v1756 = vmax.f32 %v1518, 0.0
        %v1757 = vmax.f32 %v1567, 0.0
        %v1758 = vmax.f32 %v1616, 0.0
        %v1759 = vmax.f32 %v1665, 0.0
        %v1760 = vmax.f32 %v1714, 0.0
        %v1761 = vmax.f32 %v1373, 0.0
        %v1762 = vmax.f32 %v1422, 0.0
        %v1763 = vmax.f32 %v1471, 0.0
        %v1764 = vmax.f32 %v1520, 0.0
        %v1765 = vmax.f32 %v1569, 0.0
        %v1766 = vmax.f32 %v1618, 0.0
        %v1767 = vmax.f32 %v1667, 0.0
        %v1768 = vmax.f32 %v1716, 0.0
        %v1769 = vmax.f32 %v1376, 0.0
        %v1770 = vmax.f32 %v1425, 0.0
        %v1771 = vmax.f32 %v1474, 0.0
        %v1772 = vmax.f32 %v1523, 0.0
        %v1773 = vmax.f32 %v1572, 0.0
        %v1774 = vmax.f32 %v1621, 0.0
        %v1775 = vmax.f32 %v1670, 0.0
        %v1776 = vmax.f32 %v1719, 0.0
        %v1777 = vmax.f32 %v1378, 0.0
        %v1778 = vmax.f32 %v1427, 0.0
        %v1779 = vmax.f32 %v1476, 0.0
        %v1780 = vmax.f32 %v1525, 0.0
        %v1781 = vmax.f32 %v1574, 0.0
        %v1782 = vmax.f32 %v1623, 0.0
        %v1783 = vmax.f32 %v1672, 0.0
        %v1784 = vmax.f32 %v1721, 0.0
        %v1785 = vmax.f32 %v1381, 0.0
        %v1786 = vmax.f32 %v1430, 0.0
        %v1787 = vmax.f32 %v1479, 0.0
        %v1788 = vmax.f32 %v1528, 0.0
        %v1789 = vmax.f32 %v1577, 0.0
        %v1790 = vmax.f32 %v1626, 0.0
        %v1791 = vmax.f32 %v1675, 0.0
        %v1792 = vmax.f32 %v1724, 0.0
        %v1793 = vmax.f32 %v1383, 0.0
        %v1794 = vmax.f32 %v1432, 0.0
        %v1795 = vmax.f32 %v1481, 0.0
        %v1796 = vmax.f32 %v1530, 0.0
        %v1797 = vmax.f32 %v1579, 0.0
        %v1798 = vmax.f32 %v1628, 0.0
        %v1799 = vmax.f32 %v1677, 0.0
        %v1800 = vmax.f32 %v1726, 0.0
        %v1801 = vmax.f32 %v1386, 0.0
        %v1802 = vmax.f32 %v1435, 0.0
        %v1803 = vmax.f32 %v1484, 0.0
        %v1804 = vmax.f32 %v1533, 0.0
        %v1805 = vmax.f32 %v1582, 0.0
        %v1806 = vmax.f32 %v1631, 0.0
        %v1807 = vmax.f32 %v1680, 0.0
        %v1808 = vmax.f32 %v1729, 0.0
        %v1809 = vmax.f32 %v1388, 0.0
        %v1810 = vmax.f32 %v1437, 0.0
        %v1811 = vmax.f32 %v1486, 0.0
        %v1812 = vmax.f32 %v1535, 0.0
        %v1813 = vmax.f32 %v1584, 0.0
        %v1814 = vmax.f32 %v1633, 0.0
        %v1815 = vmax.f32 %v1682, 0.0
        %v1816 = vmax.f32 %v1731, 0.0
        %v1817 = vmax.f32 %v1391, 0.0
        %v1818 = vmax.f32 %v1440, 0.0
        %v1819 = vmax.f32 %v1489, 0.0
        %v1820 = vmax.f32 %v1538, 0.0
        %v1821 = vmax.f32 %v1587, 0.0
        %v1822 = vmax.f32 %v1636, 0.0
        %v1823 = vmax.f32 %v1685, 0.0
        %v1824 = vmax.f32 %v1734, 0.0
        %v1825 = vmax.f32 %v1393, 0.0
        %v1826 = vmax.f32 %v1442, 0.0
        %v1827 = vmax.f32 %v1491, 0.0
        %v1828 = vmax.f32 %v1540, 0.0
        %v1829 = vmax.f32 %v1589, 0.0
        %v1830 = vmax.f32 %v1638, 0.0
        %v1831 = vmax.f32 %v1687, 0.0
        %v1832 = vmax.f32 %v1736, 0.0
        %v1833 = vmax.f32 %v1396, 0.0
        %v1834 = vmax.f32 %v1445, 0.0
        %v1835 = vmax.f32 %v1494, 0.0
        %v1836 = vmax.f32 %v1543, 0.0
        %v1837 = vmax.f32 %v1592, 0.0
        %v1838 = vmax.f32 %v1641, 0.0
        %v1839 = vmax.f32 %v1690, 0.0
        %v1840 = vmax.f32 %v1739, 0.0
        %v1841 = vmax.f32 %v1398, 0.0
        %v1842 = vmax.f32 %v1447, 0.0
        %v1843 = vmax.f32 %v1496, 0.0
        %v1844 = vmax.f32 %v1545, 0.0
        %v1845 = vmax.f32 %v1594, 0.0
        %v1846 = vmax.f32 %v1643, 0.0
        %v1847 = vmax.f32 %v1692, 0.0
        %v1848 = vmax.f32 %v1741, 0.0
        %v1849 = vmax.f32 %v1401, 0.0
        %v1850 = vmax.f32 %v1450, 0.0
        %v1851 = vmax.f32 %v1499, 0.0
        %v1852 = vmax.f32 %v1548, 0.0
        %v1853 = vmax.f32 %v1597, 0.0
        %v1854 = vmax.f32 %v1646, 0.0
        %v1855 = vmax.f32 %v1695, 0.0
        %v1856 = vmax.f32 %v1744, 0.0
        %v1857 = vmax.f32 %v1403, 0.0
        %v1858 = vmax.f32 %v1452, 0.0
        %v1859 = vmax.f32 %v1501, 0.0
        %v1860 = vmax.f32 %v1550, 0.0
        %v1861 = vmax.f32 %v1599, 0.0
        %v1862 = vmax.f32 %v1648, 0.0
        %v1863 = vmax.f32 %v1697, 0.0
        %v1864 = vmax.f32 %v1746, 0.0
        %v1865 = vmax.f32 %v1406, 0.0
        %v1866 = vmax.f32 %v1455, 0.0
        %v1867 = vmax.f32 %v1504, 0.0
        %v1868 = vmax.f32 %v1553, 0.0
        %v1869 = vmax.f32 %v1602, 0.0
        %v1870 = vmax.f32 %v1651, 0.0
        %v1871 = vmax.f32 %v1700, 0.0
        %v1872 = vmax.f32 %v1749, 0.0
        %v1873 = vmax.f32 %v1408, 0.0
        %v1874 = vmax.f32 %v1457, 0.0
        %v1875 = vmax.f32 %v1506, 0.0
        %v1876 = vmax.f32 %v1555, 0.0
        %v1877 = vmax.f32 %v1604, 0.0
        %v1878 = vmax.f32 %v1653, 0.0
        %v1879 = vmax.f32 %v1702, 0.0
        %v1880 = vmax.f32 %v1751, 0.0
        %1881 = vst [vmem:[%s262] sm:$0xff] %v1753
        %1882 = vst [vmem:[%s262 + $0x8] sm:$0xff] %v1754
        %1883 = vst [vmem:[%s262 + $0x10] sm:$0xff] %v1755
        %1884 = vst [vmem:[%s262 + $0x18] sm:$0xff] %v1756
        %1885 = vst [vmem:[%s262 + $0x20] sm:$0xff] %v1757
        %1886 = vst [vmem:[%s262 + $0x28] sm:$0xff] %v1758
        %1887 = vst [vmem:[%s262 + $0x30] sm:$0xff] %v1759
        %1888 = vst [vmem:[%s262 + $0x38] sm:$0xff] %v1760
        %1889 = vst [vmem:[%s262 + $0x40] sm:$0xff] %v1761
        %1890 = vst [vmem:[%s262 + $0x48] sm:$0xff] %v1762
        %1891 = vst [vmem:[%s262 + $0x50] sm:$0xff] %v1763
        %1892 = vst [vmem:[%s262 + $0x58] sm:$0xff] %v1764
        %1893 = vst [vmem:[%s262 + $0x60] sm:$0xff] %v1765
        %1894 = vst [vmem:[%s262 + $0x68] sm:$0xff] %v1766
        %1895 = vst [vmem:[%s262 + $0x70] sm:$0xff] %v1767
        %1896 = vst [vmem:[%s262 + $0x78] sm:$0xff] %v1768
        %1897 = vst [vmem:[%s262 + $0x80] sm:$0xff] %v1769
        %1898 = vst [vmem:[%s262 + $0x88] sm:$0xff] %v1770
        %1899 = vst [vmem:[%s262 + $0x90] sm:$0xff] %v1771
        %1900 = vst [vmem:[%s262 + $0x98] sm:$0xff] %v1772
        %1901 = vst [vmem:[%s262 + $0xa0] sm:$0xff] %v1773
        %1902 = vst [vmem:[%s262 + $0xa8] sm:$0xff] %v1774
        %1903 = vst [vmem:[%s262 + $0xb0] sm:$0xff] %v1775
        %1904 = vst [vmem:[%s262 + $0xb8] sm:$0xff] %v1776
        %1905 = vst [vmem:[%s262 + $0xc0] sm:$0xff] %v1777
        %1906 = vst [vmem:[%s262 + $0xc8] sm:$0xff] %v1778
        %1907 = vst [vmem:[%s262 + $0xd0] sm:$0xff] %v1779
        %1908 = vst [vmem:[%s262 + $0xd8] sm:$0xff] %v1780
        %1909 = vst [vmem:[%s262 + $0xe0] sm:$0xff] %v1781
        %1910 = vst [vmem:[%s262 + $0xe8] sm:$0xff] %v1782
        %1911 = vst [vmem:[%s262 + $0xf0] sm:$0xff] %v1783
        %1912 = vst [vmem:[%s262 + $0xf8] sm:$0xff] %v1784
        %1913 = vst [vmem:[%s262 + $0x100] sm:$0xff] %v1785
        %1914 = vst [vmem:[%s262 + $0x108] sm:$0xff] %v1786
        %1915 = vst [vmem:[%s262 + $0x110] sm:$0xff] %v1787
        %1916 = vst [vmem:[%s262 + $0x118] sm:$0xff] %v1788
        %1917 = vst [vmem:[%s262 + $0x120] sm:$0xff] %v1789
        %1918 = vst [vmem:[%s262 + $0x128] sm:$0xff] %v1790
        %1919 = vst [vmem:[%s262 + $0x130] sm:$0xff] %v1791
        %1920 = vst [vmem:[%s262 + $0x138] sm:$0xff] %v1792
        %1921 = vst [vmem:[%s262 + $0x140] sm:$0xff] %v1793
        %1922 = vst [vmem:[%s262 + $0x148] sm:$0xff] %v1794
        %1923 = vst [vmem:[%s262 + $0x150] sm:$0xff] %v1795
        %1924 = vst [vmem:[%s262 + $0x158] sm:$0xff] %v1796
        %1925 = vst [vmem:[%s262 + $0x160] sm:$0xff] %v1797
        %1926 = vst [vmem:[%s262 + $0x168] sm:$0xff] %v1798
        %1927 = vst [vmem:[%s262 + $0x170] sm:$0xff] %v1799
        %1928 = vst [vmem:[%s262 + $0x178] sm:$0xff] %v1800
        %1929 = vst [vmem:[%s262 + $0x180] sm:$0xff] %v1801
        %1930 = vst [vmem:[%s262 + $0x188] sm:$0xff] %v1802
        %1931 = vst [vmem:[%s262 + $0x190] sm:$0xff] %v1803
        %1932 = vst [vmem:[%s262 + $0x198] sm:$0xff] %v1804
        %1933 = vst [vmem:[%s262 + $0x1a0] sm:$0xff] %v1805
        %1934 = vst [vmem:[%s262 + $0x1a8] sm:$0xff] %v1806
        %1935 = vst [vmem:[%s262 + $0x1b0] sm:$0xff] %v1807
        %1936 = vst [vmem:[%s262 + $0x1b8] sm:$0xff] %v1808
        %1937 = vst [vmem:[%s262 + $0x1c0] sm:$0xff] %v1809
        %1938 = vst [vmem:[%s262 + $0x1c8] sm:$0xff] %v1810
        %1939 = vst [vmem:[%s262 + $0x1d0] sm:$0xff] %v1811
        %1940 = vst [vmem:[%s262 + $0x1d8] sm:$0xff] %v1812
        %1941 = vst [vmem:[%s262 + $0x1e0] sm:$0xff] %v1813
        %1942 = vst [vmem:[%s262 + $0x1e8] sm:$0xff] %v1814
        %1943 = vst [vmem:[%s262 + $0x1f0] sm:$0xff] %v1815
        %1944 = vst [vmem:[%s262 + $0x1f8] sm:$0xff] %v1816
        %1945 = vst [vmem:[%s262 + $0x200] sm:$0xff] %v1817
        %1946 = vst [vmem:[%s262 + $0x208] sm:$0xff] %v1818
        %1947 = vst [vmem:[%s262 + $0x210] sm:$0xff] %v1819
        %1948 = vst [vmem:[%s262 + $0x218] sm:$0xff] %v1820
        %1949 = vst [vmem:[%s262 + $0x220] sm:$0xff] %v1821
        %1950 = vst [vmem:[%s262 + $0x228] sm:$0xff] %v1822
        %1951 = vst [vmem:[%s262 + $0x230] sm:$0xff] %v1823
        %1952 = vst [vmem:[%s262 + $0x238] sm:$0xff] %v1824
        %1953 = vst [vmem:[%s262 + $0x240] sm:$0xff] %v1825
        %1954 = vst [vmem:[%s262 + $0x248] sm:$0xff] %v1826
        %1955 = vst [vmem:[%s262 + $0x250] sm:$0xff] %v1827
        %1956 = vst [vmem:[%s262 + $0x258] sm:$0xff] %v1828
        %1957 = vst [vmem:[%s262 + $0x260] sm:$0xff] %v1829
        %1958 = vst [vmem:[%s262 + $0x268] sm:$0xff] %v1830
        %1959 = vst [vmem:[%s262 + $0x270] sm:$0xff] %v1831
        %1960 = vst [vmem:[%s262 + $0x278] sm:$0xff] %v1832
        %1961 = vst [vmem:[%s262 + $0x280] sm:$0xff] %v1833
        %1962 = vst [vmem:[%s262 + $0x288] sm:$0xff] %v1834
        %1963 = vst [vmem:[%s262 + $0x290] sm:$0xff] %v1835
        %1964 = vst [vmem:[%s262 + $0x298] sm:$0xff] %v1836
        %1965 = vst [vmem:[%s262 + $0x2a0] sm:$0xff] %v1837
        %1966 = vst [vmem:[%s262 + $0x2a8] sm:$0xff] %v1838
        %1967 = vst [vmem:[%s262 + $0x2b0] sm:$0xff] %v1839
        %1968 = vst [vmem:[%s262 + $0x2b8] sm:$0xff] %v1840
        %1969 = vst [vmem:[%s262 + $0x2c0] sm:$0xff] %v1841
        %1970 = vst [vmem:[%s262 + $0x2c8] sm:$0xff] %v1842
        %1971 = vst [vmem:[%s262 + $0x2d0] sm:$0xff] %v1843
        %1972 = vst [vmem:[%s262 + $0x2d8] sm:$0xff] %v1844
        %1973 = vst [vmem:[%s262 + $0x2e0] sm:$0xff] %v1845
        %1974 = vst [vmem:[%s262 + $0x2e8] sm:$0xff] %v1846
        %1975 = vst [vmem:[%s262 + $0x2f0] sm:$0xff] %v1847
        %1976 = vst [vmem:[%s262 + $0x2f8] sm:$0xff] %v1848
        %1977 = vst [vmem:[%s262 + $0x300] sm:$0xff] %v1849
        %1978 = vst [vmem:[%s262 + $0x308] sm:$0xff] %v1850
        %1979 = vst [vmem:[%s262 + $0x310] sm:$0xff] %v1851
        %1980 = vst [vmem:[%s262 + $0x318] sm:$0xff] %v1852
        %1981 = vst [vmem:[%s262 + $0x320] sm:$0xff] %v1853
        %1982 = vst [vmem:[%s262 + $0x328] sm:$0xff] %v1854
        %1983 = vst [vmem:[%s262 + $0x330] sm:$0xff] %v1855
        %1984 = vst [vmem:[%s262 + $0x338] sm:$0xff] %v1856
        %1985 = vst [vmem:[%s262 + $0x340] sm:$0xff] %v1857
        %1986 = vst [vmem:[%s262 + $0x348] sm:$0xff] %v1858
        %1987 = vst [vmem:[%s262 + $0x350] sm:$0xff] %v1859
        %1988 = vst [vmem:[%s262 + $0x358] sm:$0xff] %v1860
        %1989 = vst [vmem:[%s262 + $0x360] sm:$0xff] %v1861
        %1990 = vst [vmem:[%s262 + $0x368] sm:$0xff] %v1862
        %1991 = vst [vmem:[%s262 + $0x370] sm:$0xff] %v1863
        %1992 = vst [vmem:[%s262 + $0x378] sm:$0xff] %v1864
        %1993 = vst [vmem:[%s262 + $0x380] sm:$0xff] %v1865
        %1994 = vst [vmem:[%s262 + $0x388] sm:$0xff] %v1866
        %1995 = vst [vmem:[%s262 + $0x390] sm:$0xff] %v1867
        %1996 = vst [vmem:[%s262 + $0x398] sm:$0xff] %v1868
        %1997 = vst [vmem:[%s262 + $0x3a0] sm:$0xff] %v1869
        %1998 = vst [vmem:[%s262 + $0x3a8] sm:$0xff] %v1870
        %1999 = vst [vmem:[%s262 + $0x3b0] sm:$0xff] %v1871
        %2000 = vst [vmem:[%s262 + $0x3b8] sm:$0xff] %v1872
        %2001 = vst [vmem:[%s262 + $0x3c0] sm:$0xff] %v1873
        %2002 = vst [vmem:[%s262 + $0x3c8] sm:$0xff] %v1874
        %2003 = vst [vmem:[%s262 + $0x3d0] sm:$0xff] %v1875
        %2004 = vst [vmem:[%s262 + $0x3d8] sm:$0xff] %v1876
        %2005 = vst [vmem:[%s262 + $0x3e0] sm:$0xff] %v1877
        %2006 = vst [vmem:[%s262 + $0x3e8] sm:$0xff] %v1878
        %2007 = vst [vmem:[%s262 + $0x3f0] sm:$0xff] %v1879
        %2008 = vst [vmem:[%s262 + $0x3f8] sm:$0xff] %v1880
        %s2009 = sand.u32 %s156, 1
        %s2010 = scalar_lea.sflag [#allocation4], %s2009
        %s2011 = sand.u32 %s156, 1
        %s2012 = smul.addr %s2011, 1024
        %s2013 = scalar_lea.vmem [#allocation5], %s2012
        // Predicated region
        $region45: #{tpu_custom_call.1} parent=39 // pred_check
          %p2014 = pneg %p166
        $region46: #{tpu_custom_call.1} parent=39 // pred_check_branch
          %2016 = sbr.rel (%p2014) target = $region48
        $region47: #{tpu_custom_call.1} parent=39 // pred_region
          %s2017 = smul.u32 8, %s27
          %2019 = vsyncadd %s2010, 0
          %s2020 = smul.addr %s26, 128
          %s2021 = sadd.s32 %s2017, %s2020
          %s2022 = smul.addr %s2021, 8
          %s2023 = scalar_lea.hbm %s5, %s2022
          %s2024 = sshll.u32 %s2013, 4
          %s2025 = int_to_ptr.vmem [resolvable:$true] %s2024
          %s2026 = sshll.u32 %s2023, 4
          %s2027 = int_to_ptr.hbm [resolvable:$true] %s2026
          %2032 = dma.vmem_to_hbm [thread:$0]  %s2025, 16384, %s2027, %s2010, 1024, 1024, 64
        $region48: #{tpu_custom_call.1} parent=39 // pred_fallthru
          _
      $region40: #{tpu_custom_call.1} parent=5 // pred_fallthru
        _
      %p2033 = scmp.le.s32.totalorder 2, %s17
      // Predicated region
      $region49: #{tpu_custom_call.1} parent=5 // pred_check
        %p2034 = pneg %p2033
      $region50: #{tpu_custom_call.1} parent=5 // pred_check_branch
        %2036 = sbr.rel (%p2034) target = $region52
      $region51: #{tpu_custom_call.1} parent=5 // pred_region
        %s2037 = ssub.s32 %s17, 2
        // Predicated region
        $region53: #{tpu_custom_call.1} parent=51 // pred_check
          %p2038 = pneg %p172
        $region54: #{tpu_custom_call.1} parent=51 // pred_check_branch
          %2040 = sbr.rel (%p2038) target = $region56
        $region55: #{tpu_custom_call.1} parent=51 // pred_region
          %s2041 = sand.u32 %s157, 1
          %s2042 = scalar_lea.sflag [#allocation4], %s2041
          %s2043 = sand.u32 %s157, 1
          %s2044 = smul.addr %s2043, 1024
          %s2045 = scalar_lea.vmem [#allocation5], %s2044
          %2047 = dma.done %s2042, 16384
        $region56: #{tpu_custom_call.1} parent=51 // pred_fallthru
          _
      $region52: #{tpu_custom_call.1} parent=5 // pred_fallthru
        _
    $region6: #{tpu_custom_call.1} parent=1 // loop_footer
      %s21 = sadd.s32 1, %s17
    $region7: #{tpu_custom_call.1} parent=1 // loop_footer_branch
      %16 = sbr.rel target = $region3
    $region8: #{tpu_custom_call.1} parent=1 // loop_exit
      _
    %2048 = vsyncpa [#allocation3], 1
    %s2049 = scalar_lea.sflag [#allocation3], 1
    %2050 = vsyncpa %s2049, 1
    %2051 = vsyncpa [#allocation4], 1
    %s2052 = scalar_lea.sflag [#allocation4], 1
    %2053 = vsyncpa %s2052, 1

</llo_original>
